<compile_context>
chip_gen: v7x
topology: tpu7x:2x2x1
jax: 0.10.0
libtpu: 0.0.40
codegen_flags: <defaults>
</compile_context>

<pallas_src>
from functools import partial

import jax
import jax.numpy as jnp
from jax.experimental import pallas as pl
from jax.experimental.pallas import tpu as pltpu


# ------------------------------ fused kernel -------------------------------

def _fused_autoencoder_kernel(*refs, meta, n_enc):
    """Runs the full encoder+decoder stack on one batch tile, all in VMEM.

    refs = (x_ref, w0, b0, w1, b1, ..., latent_ref, recon_ref)
    meta = static tuple of (kind, relu) per layer ('linear' | 'interact').
    Activations are kept as a list of feature segments; the implicit concat
    produced by interact layers is folded into the next matmul via weight-row
    slicing, so no concatenate / lane repack is ever emitted.
    """
    n_layers = len(meta)
    x_ref = refs[0]
    param_refs = refs[1:1 + 2 * n_layers]
    latent_ref, recon_ref = refs[1 + 2 * n_layers:]

    segs = [x_ref[...].astype(jnp.float32)]   # list of (tile_b, width) pieces
    latent_segs = None

    for li, (kind, relu) in enumerate(meta):
        w_ref = param_refs[2 * li]
        b_ref = param_refs[2 * li + 1]
        b = b_ref[...]                         # (1, dout), broadcasts over rows

        # proj = concat(segs) @ W + b, computed without materializing the concat
        acc = None
        off = 0
        for seg in segs:
            width = seg.shape[1]
            part = jnp.dot(seg, w_ref[off:off + width, :],
                           preferred_element_type=jnp.float32)
            acc = part if acc is None else acc + part
            off += width
        proj = acc + b

        if kind == "linear":
            y = jnp.maximum(proj, 0.0) if relu else proj
            segs = [y]
        else:  # 'interact': forward() appends (proj * x) to x along features
            inter_segs = []
            off = 0
            for seg in segs:
                width = seg.shape[1]
                inter_segs.append(proj[:, off:off + width] * seg)
                off += width
            segs = segs + inter_segs

        if li == n_enc - 1:
            latent_segs = segs

    # Only these two stores ever reach the output (HBM) path.
    off = 0
    for seg in latent_segs:
        width = seg.shape[1]
        latent_ref[:, off:off + width] = seg.astype(latent_ref.dtype)
        off += width
    off = 0
    for seg in segs:
        width = seg.shape[1]
        recon_ref[:, off:off + width] = seg.astype(recon_ref.dtype)
        off += width


# --------------------------- parameter building ----------------------------

def _init_linear(key, din, dout):
    kw, kb = jax.random.split(key)
    scale = 1.0 / jnp.sqrt(jnp.float32(din))
    w = jax.random.uniform(kw, (din, dout), jnp.float32, -scale, scale)
    # bias pre-reshaped to (1, dout): hoists the per-call reshape out of forward
    b = jax.random.uniform(kb, (1, dout), jnp.float32, -scale, scale)
    return {"w": w, "b": b}


def build_layer_spec(key, spec, input_dim, final_dim):
    """Mirror of `layers.layer_spec`: list of ('linear'|'interact', params, relu)."""
    layers_out = []
    dim = input_dim
    for s in spec:
        key, sub = jax.random.split(key)
        if s == "interact":
            layers_out.append(("interact", _init_linear(sub, dim, dim), False))
            dim = 2 * dim  # forward() concatenates x with the interaction output
        else:
            layers_out.append(("linear", _init_linear(sub, dim, s), True))
            dim = s
    key, sub = jax.random.split(key)
    layers_out.append(("linear", _init_linear(sub, dim, final_dim), False))
    return layers_out, key


# ------------------------------- forward -----------------------------------

def autoencoder_forward(x, encoder_layers, decoder_layers):
    """One fused pallas_call over the whole encoder+decoder stack."""
    batch, input_dim = x.shape
    all_layers = list(encoder_layers) + list(decoder_layers)
    n_enc = len(encoder_layers)
    meta = tuple((kind, relu) for kind, _p, relu in all_layers)

    # output dims: latent = dim after encoder, recon = dim after decoder
    def _out_dim(layer_list, din):
        d = din
        for kind, p, _relu in layer_list:
            d = 2 * d if kind == "interact" else p["w"].shape[1]
        return d

    latent_dim = _out_dim(encoder_layers, input_dim)
    recon_dim = _out_dim(decoder_layers, latent_dim)

    # batch tiling: single tile at small batch; multiple pipelined/parallel
    # tiles (both TCs on v7x) at large batch.
    tile_b = batch if batch <= 256 else 256
    if batch % tile_b != 0:
        tile_b = batch
    grid = (pl.cdiv(batch, tile_b),)

    params_flat = []
    for _kind, p, _relu in all_layers:
        params_flat.extend([p["w"], p["b"]])

    in_specs = [pl.BlockSpec((tile_b, input_dim), lambda i: (i, 0))]
    for arr in params_flat:  # weights/biases: whole array, resident across grid
        in_specs.append(pl.BlockSpec(arr.shape, lambda i: (0, 0)))

    out_specs = (
        pl.BlockSpec((tile_b, latent_dim), lambda i: (i, 0)),
        pl.BlockSpec((tile_b, recon_dim), lambda i: (i, 0)),
    )
    out_shape = (
        jax.ShapeDtypeStruct((batch, latent_dim), jnp.float32),
        jax.ShapeDtypeStruct((batch, recon_dim), jnp.float32),
    )

    latent, reconstructed = pl.pallas_call(
        partial(_fused_autoencoder_kernel, meta=meta, n_enc=n_enc),
        grid=grid,
        in_specs=in_specs,
        out_specs=out_specs,
        out_shape=out_shape,
        compiler_params=pltpu.CompilerParams(
            dimension_semantics=("parallel",),
        ),
    )(x, *params_flat)
    return reconstructed, latent


# pure-JAX reference (matches the PyTorch forward semantics exactly)
def _ref_forward(x, encoder_layers, decoder_layers):
    def stack(x, ls):
        for kind, p, relu in ls:
            if kind == "interact":
                inter = (x @ p["w"] + p["b"]) * x
                x = jnp.concatenate([x, inter], axis=1)
            else:
                x = x @ p["w"] + p["b"]
                if relu:
                    x = jnp.maximum(x, 0.0)
        return x
    latent = stack(x, encoder_layers)
    return stack(latent, decoder_layers), latent


# --------------------------------- main -------------------------------------

if __name__ == "__main__":
    batch = 8
    input_dim = 64
    latent_dim = 32
    encoder_spec = [128, "interact", 64, latent_dim]
    decoder_spec = encoder_spec[::-1]

    key = jax.random.PRNGKey(0)
    key, kx = jax.random.split(key)
    x = jax.random.normal(kx, (batch, input_dim), jnp.float32)

    encoder_layers, key = build_layer_spec(key, encoder_spec, input_dim, latent_dim)
    decoder_layers, key = build_layer_spec(key, decoder_spec, latent_dim, input_dim)

    reconstructed, latent = autoencoder_forward(x, encoder_layers, decoder_layers)
    jax.block_until_ready((reconstructed, latent))

    ref_rec, ref_lat = _ref_forward(x, encoder_layers, decoder_layers)
    assert reconstructed.shape == (batch, input_dim)
    assert latent.shape == (batch, latent_dim)
    assert jnp.allclose(latent, ref_lat, atol=1e-4, rtol=1e-4)
    assert jnp.allclose(reconstructed, ref_rec, atol=1e-4, rtol=1e-4)

    print("KERNEL_OK")
</pallas_src>

<mosaic_0001>
module attributes {stable_mosaic.version = 11 : i64} {
  func.func @_fused_autoencoder_kernel(%arg0: i32, %arg1: memref<8x64xf32, #tpu.memory_space<vmem>>, %arg2: memref<64x128xf32, #tpu.memory_space<vmem>>, %arg3: memref<1x128xf32, #tpu.memory_space<vmem>>, %arg4: memref<128x128xf32, #tpu.memory_space<vmem>>, %arg5: memref<1x128xf32, #tpu.memory_space<vmem>>, %arg6: memref<256x64xf32, #tpu.memory_space<vmem>>, %arg7: memref<1x64xf32, #tpu.memory_space<vmem>>, %arg8: memref<64x32xf32, #tpu.memory_space<vmem>>, %arg9: memref<1x32xf32, #tpu.memory_space<vmem>>, %arg10: memref<32x32xf32, #tpu.memory_space<vmem>>, %arg11: memref<1x32xf32, #tpu.memory_space<vmem>>, %arg12: memref<32x32xf32, #tpu.memory_space<vmem>>, %arg13: memref<1x32xf32, #tpu.memory_space<vmem>>, %arg14: memref<32x64xf32, #tpu.memory_space<vmem>>, %arg15: memref<1x64xf32, #tpu.memory_space<vmem>>, %arg16: memref<64x64xf32, #tpu.memory_space<vmem>>, %arg17: memref<1x64xf32, #tpu.memory_space<vmem>>, %arg18: memref<128x128xf32, #tpu.memory_space<vmem>>, %arg19: memref<1x128xf32, #tpu.memory_space<vmem>>, %arg20: memref<128x64xf32, #tpu.memory_space<vmem>>, %arg21: memref<1x64xf32, #tpu.memory_space<vmem>>, %arg22: memref<8x32xf32, #tpu.memory_space<vmem>>, %arg23: memref<8x64xf32, #tpu.memory_space<vmem>>) attributes {dimension_semantics = [#tpu.dimension_semantics<parallel>], iteration_bounds = array<i64: 1>, scalar_prefetch = 0 : i64, scratch_operands = 0 : i64, tpu.core_type = #tpu.core_type<tc>, window_params = [{transform_indices = @transform_0, window_bounds = array<i64: 8, 64>}, {pipeline_mode = #tpu.pipeline_mode<synchronous>, transform_indices = @transform_1, window_bounds = array<i64: 64, 128>}, {pipeline_mode = #tpu.pipeline_mode<synchronous>, transform_indices = @transform_2, window_bounds = array<i64: 1, 128>}, {pipeline_mode = #tpu.pipeline_mode<synchronous>, transform_indices = @transform_3, window_bounds = array<i64: 128, 128>}, {pipeline_mode = #tpu.pipeline_mode<synchronous>, transform_indices = @transform_4, window_bounds = array<i64: 1, 128>}, {pipeline_mode = #tpu.pipeline_mode<synchronous>, transform_indices = @transform_5, window_bounds = array<i64: 256, 64>}, {pipeline_mode = #tpu.pipeline_mode<synchronous>, transform_indices = @transform_6, window_bounds = array<i64: 1, 64>}, {pipeline_mode = #tpu.pipeline_mode<synchronous>, transform_indices = @transform_7, window_bounds = array<i64: 64, 32>}, {pipeline_mode = #tpu.pipeline_mode<synchronous>, transform_indices = @transform_8, window_bounds = array<i64: 1, 32>}, {pipeline_mode = #tpu.pipeline_mode<synchronous>, transform_indices = @transform_9, window_bounds = array<i64: 32, 32>}, {pipeline_mode = #tpu.pipeline_mode<synchronous>, transform_indices = @transform_10, window_bounds = array<i64: 1, 32>}, {pipeline_mode = #tpu.pipeline_mode<synchronous>, transform_indices = @transform_11, window_bounds = array<i64: 32, 32>}, {pipeline_mode = #tpu.pipeline_mode<synchronous>, transform_indices = @transform_12, window_bounds = array<i64: 1, 32>}, {pipeline_mode = #tpu.pipeline_mode<synchronous>, transform_indices = @transform_13, window_bounds = array<i64: 32, 64>}, {pipeline_mode = #tpu.pipeline_mode<synchronous>, transform_indices = @transform_14, window_bounds = array<i64: 1, 64>}, {pipeline_mode = #tpu.pipeline_mode<synchronous>, transform_indices = @transform_15, window_bounds = array<i64: 64, 64>}, {pipeline_mode = #tpu.pipeline_mode<synchronous>, transform_indices = @transform_16, window_bounds = array<i64: 1, 64>}, {pipeline_mode = #tpu.pipeline_mode<synchronous>, transform_indices = @transform_17, window_bounds = array<i64: 128, 128>}, {pipeline_mode = #tpu.pipeline_mode<synchronous>, transform_indices = @transform_18, window_bounds = array<i64: 1, 128>}, {pipeline_mode = #tpu.pipeline_mode<synchronous>, transform_indices = @transform_19, window_bounds = array<i64: 128, 64>}, {pipeline_mode = #tpu.pipeline_mode<synchronous>, transform_indices = @transform_20, window_bounds = array<i64: 1, 64>}, {transform_indices = @transform_21, window_bounds = array<i64: 8, 32>}, {transform_indices = @transform_22, window_bounds = array<i64: 8, 64>}]} {
    %c0 = arith.constant 0 : index
    %c0_0 = arith.constant 0 : index
    %0 = vector.load %arg1[%c0, %c0_0] : memref<8x64xf32, #tpu.memory_space<vmem>>, vector<8x64xf32>
    %c0_1 = arith.constant 0 : index
    %c0_2 = arith.constant 0 : index
    %1 = vector.load %arg3[%c0_1, %c0_2] : memref<1x128xf32, #tpu.memory_space<vmem>>, vector<1x128xf32>
    %c0_3 = arith.constant 0 : index
    %c0_4 = arith.constant 0 : index
    %2 = vector.load %arg2[%c0_3, %c0_4] : memref<64x128xf32, #tpu.memory_space<vmem>>, vector<64x128xf32>
    %cst = arith.constant dense<0.000000e+00> : vector<8x128xf32>
    %3 = tpu.matmul %0, %2, %cst {dimension_numbers = #tpu.dot_dimension_numbers<[1], [0], [0], [1], [0, 0, 1, 1], [], []>} : vector<8x64xf32>, vector<64x128xf32>, vector<8x128xf32> -> vector<8x128xf32>
    %4 = vector.broadcast %1 : vector<1x128xf32> to vector<8x128xf32>
    %5 = arith.addf %3, %4 : vector<8x128xf32>
    %cst_5 = arith.constant 0.000000e+00 : f32
    %6 = vector.broadcast %cst_5 : f32 to vector<8x128xf32>
    %7 = arith.maximumf %5, %6 : vector<8x128xf32>
    %c0_6 = arith.constant 0 : index
    %c0_7 = arith.constant 0 : index
    %8 = vector.load %arg5[%c0_6, %c0_7] : memref<1x128xf32, #tpu.memory_space<vmem>>, vector<1x128xf32>
    %c0_8 = arith.constant 0 : index
    %c0_9 = arith.constant 0 : index
    %9 = vector.load %arg4[%c0_8, %c0_9] : memref<128x128xf32, #tpu.memory_space<vmem>>, vector<128x128xf32>
    %cst_10 = arith.constant dense<0.000000e+00> : vector<8x128xf32>
    %10 = tpu.matmul %7, %9, %cst_10 {dimension_numbers = #tpu.dot_dimension_numbers<[1], [0], [0], [1], [0, 0, 1, 1], [], []>} : vector<8x128xf32>, vector<128x128xf32>, vector<8x128xf32> -> vector<8x128xf32>
    %11 = vector.broadcast %8 : vector<1x128xf32> to vector<8x128xf32>
    %12 = arith.addf %10, %11 : vector<8x128xf32>
    %13 = arith.mulf %12, %7 : vector<8x128xf32>
    %c0_11 = arith.constant 0 : index
    %c0_12 = arith.constant 0 : index
    %14 = vector.load %arg7[%c0_11, %c0_12] : memref<1x64xf32, #tpu.memory_space<vmem>>, vector<1x64xf32>
    %c0_13 = arith.constant 0 : index
    %c0_14 = arith.constant 0 : index
    %15 = vector.load %arg6[%c0_13, %c0_14] : memref<256x64xf32, #tpu.memory_space<vmem>>, vector<128x64xf32>
    %cst_15 = arith.constant dense<0.000000e+00> : vector<8x64xf32>
    %16 = tpu.matmul %7, %15, %cst_15 {dimension_numbers = #tpu.dot_dimension_numbers<[1], [0], [0], [1], [0, 0, 1, 1], [], []>} : vector<8x128xf32>, vector<128x64xf32>, vector<8x64xf32> -> vector<8x64xf32>
    %c128 = arith.constant 128 : index
    %c0_16 = arith.constant 0 : index
    %17 = vector.load %arg6[%c128, %c0_16] : memref<256x64xf32, #tpu.memory_space<vmem>>, vector<128x64xf32>
    %cst_17 = arith.constant dense<0.000000e+00> : vector<8x64xf32>
    %18 = tpu.matmul %13, %17, %cst_17 {dimension_numbers = #tpu.dot_dimension_numbers<[1], [0], [0], [1], [0, 0, 1, 1], [], []>} : vector<8x128xf32>, vector<128x64xf32>, vector<8x64xf32> -> vector<8x64xf32>
    %19 = arith.addf %16, %18 : vector<8x64xf32>
    %20 = vector.broadcast %14 : vector<1x64xf32> to vector<8x64xf32>
    %21 = arith.addf %19, %20 : vector<8x64xf32>
    %cst_18 = arith.constant 0.000000e+00 : f32
    %22 = vector.broadcast %cst_18 : f32 to vector<8x64xf32>
    %23 = arith.maximumf %21, %22 : vector<8x64xf32>
    %c0_19 = arith.constant 0 : index
    %c0_20 = arith.constant 0 : index
    %24 = vector.load %arg9[%c0_19, %c0_20] : memref<1x32xf32, #tpu.memory_space<vmem>>, vector<1x32xf32>
    %c0_21 = arith.constant 0 : index
    %c0_22 = arith.constant 0 : index
    %25 = vector.load %arg8[%c0_21, %c0_22] : memref<64x32xf32, #tpu.memory_space<vmem>>, vector<64x32xf32>
    %cst_23 = arith.constant dense<0.000000e+00> : vector<8x32xf32>
    %26 = tpu.matmul %23, %25, %cst_23 {dimension_numbers = #tpu.dot_dimension_numbers<[1], [0], [0], [1], [0, 0, 1, 1], [], []>} : vector<8x64xf32>, vector<64x32xf32>, vector<8x32xf32> -> vector<8x32xf32>
    %27 = vector.broadcast %24 : vector<1x32xf32> to vector<8x32xf32>
    %28 = arith.addf %26, %27 : vector<8x32xf32>
    %cst_24 = arith.constant 0.000000e+00 : f32
    %29 = vector.broadcast %cst_24 : f32 to vector<8x32xf32>
    %30 = arith.maximumf %28, %29 : vector<8x32xf32>
    %c0_25 = arith.constant 0 : index
    %c0_26 = arith.constant 0 : index
    %31 = vector.load %arg11[%c0_25, %c0_26] : memref<1x32xf32, #tpu.memory_space<vmem>>, vector<1x32xf32>
    %c0_27 = arith.constant 0 : index
    %c0_28 = arith.constant 0 : index
    %32 = vector.load %arg10[%c0_27, %c0_28] : memref<32x32xf32, #tpu.memory_space<vmem>>, vector<32x32xf32>
    %cst_29 = arith.constant dense<0.000000e+00> : vector<8x32xf32>
    %33 = tpu.matmul %30, %32, %cst_29 {dimension_numbers = #tpu.dot_dimension_numbers<[1], [0], [0], [1], [0, 0, 1, 1], [], []>} : vector<8x32xf32>, vector<32x32xf32>, vector<8x32xf32> -> vector<8x32xf32>
    %34 = vector.broadcast %31 : vector<1x32xf32> to vector<8x32xf32>
    %35 = arith.addf %33, %34 : vector<8x32xf32>
    %c0_30 = arith.constant 0 : index
    %c0_31 = arith.constant 0 : index
    %36 = vector.load %arg13[%c0_30, %c0_31] : memref<1x32xf32, #tpu.memory_space<vmem>>, vector<1x32xf32>
    %c0_32 = arith.constant 0 : index
    %c0_33 = arith.constant 0 : index
    %37 = vector.load %arg12[%c0_32, %c0_33] : memref<32x32xf32, #tpu.memory_space<vmem>>, vector<32x32xf32>
    %cst_34 = arith.constant dense<0.000000e+00> : vector<8x32xf32>
    %38 = tpu.matmul %35, %37, %cst_34 {dimension_numbers = #tpu.dot_dimension_numbers<[1], [0], [0], [1], [0, 0, 1, 1], [], []>} : vector<8x32xf32>, vector<32x32xf32>, vector<8x32xf32> -> vector<8x32xf32>
    %39 = vector.broadcast %36 : vector<1x32xf32> to vector<8x32xf32>
    %40 = arith.addf %38, %39 : vector<8x32xf32>
    %cst_35 = arith.constant 0.000000e+00 : f32
    %41 = vector.broadcast %cst_35 : f32 to vector<8x32xf32>
    %42 = arith.maximumf %40, %41 : vector<8x32xf32>
    %c0_36 = arith.constant 0 : index
    %c0_37 = arith.constant 0 : index
    %43 = vector.load %arg15[%c0_36, %c0_37] : memref<1x64xf32, #tpu.memory_space<vmem>>, vector<1x64xf32>
    %c0_38 = arith.constant 0 : index
    %c0_39 = arith.constant 0 : index
    %44 = vector.load %arg14[%c0_38, %c0_39] : memref<32x64xf32, #tpu.memory_space<vmem>>, vector<32x64xf32>
    %cst_40 = arith.constant dense<0.000000e+00> : vector<8x64xf32>
    %45 = tpu.matmul %42, %44, %cst_40 {dimension_numbers = #tpu.dot_dimension_numbers<[1], [0], [0], [1], [0, 0, 1, 1], [], []>} : vector<8x32xf32>, vector<32x64xf32>, vector<8x64xf32> -> vector<8x64xf32>
    %46 = vector.broadcast %43 : vector<1x64xf32> to vector<8x64xf32>
    %47 = arith.addf %45, %46 : vector<8x64xf32>
    %cst_41 = arith.constant 0.000000e+00 : f32
    %48 = vector.broadcast %cst_41 : f32 to vector<8x64xf32>
    %49 = arith.maximumf %47, %48 : vector<8x64xf32>
    %c0_42 = arith.constant 0 : index
    %c0_43 = arith.constant 0 : index
    %50 = vector.load %arg17[%c0_42, %c0_43] : memref<1x64xf32, #tpu.memory_space<vmem>>, vector<1x64xf32>
    %c0_44 = arith.constant 0 : index
    %c0_45 = arith.constant 0 : index
    %51 = vector.load %arg16[%c0_44, %c0_45] : memref<64x64xf32, #tpu.memory_space<vmem>>, vector<64x64xf32>
    %cst_46 = arith.constant dense<0.000000e+00> : vector<8x64xf32>
    %52 = tpu.matmul %49, %51, %cst_46 {dimension_numbers = #tpu.dot_dimension_numbers<[1], [0], [0], [1], [0, 0, 1, 1], [], []>} : vector<8x64xf32>, vector<64x64xf32>, vector<8x64xf32> -> vector<8x64xf32>
    %53 = vector.broadcast %50 : vector<1x64xf32> to vector<8x64xf32>
    %54 = arith.addf %52, %53 : vector<8x64xf32>
    %55 = arith.mulf %54, %49 : vector<8x64xf32>
    %c0_47 = arith.constant 0 : index
    %c0_48 = arith.constant 0 : index
    %56 = vector.load %arg19[%c0_47, %c0_48] : memref<1x128xf32, #tpu.memory_space<vmem>>, vector<1x128xf32>
    %c0_49 = arith.constant 0 : index
    %c0_50 = arith.constant 0 : index
    %57 = vector.load %arg18[%c0_49, %c0_50] : memref<128x128xf32, #tpu.memory_space<vmem>>, vector<64x128xf32>
    %cst_51 = arith.constant dense<0.000000e+00> : vector<8x128xf32>
    %58 = tpu.matmul %49, %57, %cst_51 {dimension_numbers = #tpu.dot_dimension_numbers<[1], [0], [0], [1], [0, 0, 1, 1], [], []>} : vector<8x64xf32>, vector<64x128xf32>, vector<8x128xf32> -> vector<8x128xf32>
    %c64 = arith.constant 64 : index
    %c0_52 = arith.constant 0 : index
    %59 = vector.load %arg18[%c64, %c0_52] : memref<128x128xf32, #tpu.memory_space<vmem>>, vector<64x128xf32>
    %cst_53 = arith.constant dense<0.000000e+00> : vector<8x128xf32>
    %60 = tpu.matmul %55, %59, %cst_53 {dimension_numbers = #tpu.dot_dimension_numbers<[1], [0], [0], [1], [0, 0, 1, 1], [], []>} : vector<8x64xf32>, vector<64x128xf32>, vector<8x128xf32> -> vector<8x128xf32>
    %61 = arith.addf %58, %60 : vector<8x128xf32>
    %62 = vector.broadcast %56 : vector<1x128xf32> to vector<8x128xf32>
    %63 = arith.addf %61, %62 : vector<8x128xf32>
    %cst_54 = arith.constant 0.000000e+00 : f32
    %64 = vector.broadcast %cst_54 : f32 to vector<8x128xf32>
    %65 = arith.maximumf %63, %64 : vector<8x128xf32>
    %c0_55 = arith.constant 0 : index
    %c0_56 = arith.constant 0 : index
    %66 = vector.load %arg21[%c0_55, %c0_56] : memref<1x64xf32, #tpu.memory_space<vmem>>, vector<1x64xf32>
    %c0_57 = arith.constant 0 : index
    %c0_58 = arith.constant 0 : index
    %67 = vector.load %arg20[%c0_57, %c0_58] : memref<128x64xf32, #tpu.memory_space<vmem>>, vector<128x64xf32>
    %cst_59 = arith.constant dense<0.000000e+00> : vector<8x64xf32>
    %68 = tpu.matmul %65, %67, %cst_59 {dimension_numbers = #tpu.dot_dimension_numbers<[1], [0], [0], [1], [0, 0, 1, 1], [], []>} : vector<8x128xf32>, vector<128x64xf32>, vector<8x64xf32> -> vector<8x64xf32>
    %69 = vector.broadcast %66 : vector<1x64xf32> to vector<8x64xf32>
    %70 = arith.addf %68, %69 : vector<8x64xf32>
    %c0_60 = arith.constant 0 : index
    %c0_61 = arith.constant 0 : index
    %71 = vector.load %arg22[%c0_60, %c0_61] : memref<8x32xf32, #tpu.memory_space<vmem>>, vector<8x32xf32>
    tpu.vector_store %arg22[%c0_60, %c0_61], %35 {strides = array<i32>} : memref<8x32xf32, #tpu.memory_space<vmem>>, vector<8x32xf32>,
    %c0_62 = arith.constant 0 : index
    %c0_63 = arith.constant 0 : index
    %72 = vector.load %arg23[%c0_62, %c0_63] : memref<8x64xf32, #tpu.memory_space<vmem>>, vector<8x64xf32>
    tpu.vector_store %arg23[%c0_62, %c0_63], %70 {strides = array<i32>} : memref<8x64xf32, #tpu.memory_space<vmem>>, vector<8x64xf32>,
    return
  }
  func.func @transform_0(%arg0: i32) -> (i32, i32) {
    %c0_i32 = arith.constant 0 : i32
    %c0_i32_0 = arith.constant 0 : i32
    return %arg0, %c0_i32 : i32, i32
  }
  func.func @transform_1(%arg0: i32) -> (i32, i32) {
    %c0_i32 = arith.constant 0 : i32
    %c0_i32_0 = arith.constant 0 : i32
    %c0_i32_1 = arith.constant 0 : i32
    return %c0_i32, %c0_i32_0 : i32, i32
  }
  func.func @transform_2(%arg0: i32) -> (i32, i32) {
    %c0_i32 = arith.constant 0 : i32
    %c0_i32_0 = arith.constant 0 : i32
    %c0_i32_1 = arith.constant 0 : i32
    return %c0_i32, %c0_i32_0 : i32, i32
  }
  func.func @transform_3(%arg0: i32) -> (i32, i32) {
    %c0_i32 = arith.constant 0 : i32
    %c0_i32_0 = arith.constant 0 : i32
    %c0_i32_1 = arith.constant 0 : i32
    return %c0_i32, %c0_i32_0 : i32, i32
  }
  func.func @transform_4(%arg0: i32) -> (i32, i32) {
    %c0_i32 = arith.constant 0 : i32
    %c0_i32_0 = arith.constant 0 : i32
    %c0_i32_1 = arith.constant 0 : i32
    return %c0_i32, %c0_i32_0 : i32, i32
  }
  func.func @transform_5(%arg0: i32) -> (i32, i32) {
    %c0_i32 = arith.constant 0 : i32
    %c0_i32_0 = arith.constant 0 : i32
    %c0_i32_1 = arith.constant 0 : i32
    return %c0_i32, %c0_i32_0 : i32, i32
  }
  func.func @transform_6(%arg0: i32) -> (i32, i32) {
    %c0_i32 = arith.constant 0 : i32
    %c0_i32_0 = arith.constant 0 : i32
    %c0_i32_1 = arith.constant 0 : i32
    return %c0_i32, %c0_i32_0 : i32, i32
  }
  func.func @transform_7(%arg0: i32) -> (i32, i32) {
    %c0_i32 = arith.constant 0 : i32
    %c0_i32_0 = arith.constant 0 : i32
    %c0_i32_1 = arith.constant 0 : i32
    return %c0_i32, %c0_i32_0 : i32, i32
  }
  func.func @transform_8(%arg0: i32) -> (i32, i32) {
    %c0_i32 = arith.constant 0 : i32
    %c0_i32_0 = arith.constant 0 : i32
    %c0_i32_1 = arith.constant 0 : i32
    return %c0_i32, %c0_i32_0 : i32, i32
  }
  func.func @transform_9(%arg0: i32) -> (i32, i32) {
    %c0_i32 = arith.constant 0 : i32
    %c0_i32_0 = arith.constant 0 : i32
    %c0_i32_1 = arith.constant 0 : i32
    return %c0_i32, %c0_i32_0 : i32, i32
  }
  func.func @transform_10(%arg0: i32) -> (i32, i32) {
    %c0_i32 = arith.constant 0 : i32
    %c0_i32_0 = arith.constant 0 : i32
    %c0_i32_1 = arith.constant 0 : i32
    return %c0_i32, %c0_i32_0 : i32, i32
  }
  func.func @transform_11(%arg0: i32) -> (i32, i32) {
    %c0_i32 = arith.constant 0 : i32
    %c0_i32_0 = arith.constant 0 : i32
    %c0_i32_1 = arith.constant 0 : i32
    return %c0_i32, %c0_i32_0 : i32, i32
  }
  func.func @transform_12(%arg0: i32) -> (i32, i32) {
    %c0_i32 = arith.constant 0 : i32
    %c0_i32_0 = arith.constant 0 : i32
    %c0_i32_1 = arith.constant 0 : i32
    return %c0_i32, %c0_i32_0 : i32, i32
  }
  func.func @transform_13(%arg0: i32) -> (i32, i32) {
    %c0_i32 = arith.constant 0 : i32
    %c0_i32_0 = arith.constant 0 : i32
    %c0_i32_1 = arith.constant 0 : i32
    return %c0_i32, %c0_i32_0 : i32, i32
  }
  func.func @transform_14(%arg0: i32) -> (i32, i32) {
    %c0_i32 = arith.constant 0 : i32
    %c0_i32_0 = arith.constant 0 : i32
    %c0_i32_1 = arith.constant 0 : i32
    return %c0_i32, %c0_i32_0 : i32, i32
  }
  func.func @transform_15(%arg0: i32) -> (i32, i32) {
    %c0_i32 = arith.constant 0 : i32
    %c0_i32_0 = arith.constant 0 : i32
    %c0_i32_1 = arith.constant 0 : i32
    return %c0_i32, %c0_i32_0 : i32, i32
  }
  func.func @transform_16(%arg0: i32) -> (i32, i32) {
    %c0_i32 = arith.constant 0 : i32
    %c0_i32_0 = arith.constant 0 : i32
    %c0_i32_1 = arith.constant 0 : i32
    return %c0_i32, %c0_i32_0 : i32, i32
  }
  func.func @transform_17(%arg0: i32) -> (i32, i32) {
    %c0_i32 = arith.constant 0 : i32
    %c0_i32_0 = arith.constant 0 : i32
    %c0_i32_1 = arith.constant 0 : i32
    return %c0_i32, %c0_i32_0 : i32, i32
  }
  func.func @transform_18(%arg0: i32) -> (i32, i32) {
    %c0_i32 = arith.constant 0 : i32
    %c0_i32_0 = arith.constant 0 : i32
    %c0_i32_1 = arith.constant 0 : i32
    return %c0_i32, %c0_i32_0 : i32, i32
  }
  func.func @transform_19(%arg0: i32) -> (i32, i32) {
    %c0_i32 = arith.constant 0 : i32
    %c0_i32_0 = arith.constant 0 : i32
    %c0_i32_1 = arith.constant 0 : i32
    return %c0_i32, %c0_i32_0 : i32, i32
  }
  func.func @transform_20(%arg0: i32) -> (i32, i32) {
    %c0_i32 = arith.constant 0 : i32
    %c0_i32_0 = arith.constant 0 : i32
    %c0_i32_1 = arith.constant 0 : i32
    return %c0_i32, %c0_i32_0 : i32, i32
  }
  func.func @transform_21(%arg0: i32) -> (i32, i32) {
    %c0_i32 = arith.constant 0 : i32
    %c0_i32_0 = arith.constant 0 : i32
    return %arg0, %c0_i32 : i32, i32
  }
  func.func @transform_22(%arg0: i32) -> (i32, i32) {
    %c0_i32 = arith.constant 0 : i32
    %c0_i32_0 = arith.constant 0 : i32
    return %arg0, %c0_i32 : i32, i32
  }
}

</mosaic_0001>

<llo_original>
// kernel: tpu_custom_call.1
$region0: #{tpu_custom_call.1}
  #allocation0 [shape = 'u32[]', space=smem, size = 0x4, offset = 0x4, fixed_abs, tag = 'smem constant byte address 0x4 - core index']
  #allocation1 [shape = 'u32[144,128]{1,0:T(1,128)}', space=vmem, size = 0x12000, scoped, tag = 'internal scratch']
  %s0 = inlined_call_operand.vmem [shape: f32[8,64], index: 0, kind: input, shape index: {}]
  %s1 = inlined_call_operand.vmem [shape: f32[64,128], index: 1, kind: input, shape index: {}]
  %s2 = inlined_call_operand.vmem [shape: f32[1,128], index: 2, kind: input, shape index: {}]
  %s3 = inlined_call_operand.vmem [shape: f32[128,128], index: 3, kind: input, shape index: {}]
  %s4 = inlined_call_operand.vmem [shape: f32[1,128], index: 4, kind: input, shape index: {}]
  %s5 = inlined_call_operand.vmem [shape: f32[256,64], index: 5, kind: input, shape index: {}]
  %s6 = inlined_call_operand.vmem [shape: f32[1,64], index: 6, kind: input, shape index: {}]
  %s7 = inlined_call_operand.vmem [shape: f32[64,32], index: 7, kind: input, shape index: {}]
  %s8 = inlined_call_operand.vmem [shape: f32[1,32], index: 8, kind: input, shape index: {}]
  %s9 = inlined_call_operand.vmem [shape: f32[32,32], index: 9, kind: input, shape index: {}]
  %s10 = inlined_call_operand.vmem [shape: f32[1,32], index: 10, kind: input, shape index: {}]
  %s11 = inlined_call_operand.vmem [shape: f32[32,32], index: 11, kind: input, shape index: {}]
  %s12 = inlined_call_operand.vmem [shape: f32[1,32], index: 12, kind: input, shape index: {}]
  %s13 = inlined_call_operand.vmem [shape: f32[32,64], index: 13, kind: input, shape index: {}]
  %s14 = inlined_call_operand.vmem [shape: f32[1,64], index: 14, kind: input, shape index: {}]
  %s15 = inlined_call_operand.vmem [shape: f32[64,64], index: 15, kind: input, shape index: {}]
  %s16 = inlined_call_operand.vmem [shape: f32[1,64], index: 16, kind: input, shape index: {}]
  %s17 = inlined_call_operand.vmem [shape: f32[128,128], index: 17, kind: input, shape index: {}]
  %s18 = inlined_call_operand.vmem [shape: f32[1,128], index: 18, kind: input, shape index: {}]
  %s19 = inlined_call_operand.vmem [shape: f32[128,64], index: 19, kind: input, shape index: {}]
  %s20 = inlined_call_operand.vmem [shape: f32[1,64], index: 20, kind: input, shape index: {}]
  %s21 = inlined_call_operand.hbm [shape: f32[8,32], index: 21, kind: output, shape index: {0}]
  %s22 = inlined_call_operand.hbm [shape: f32[8,64], index: 22, kind: output, shape index: {1}]
  %23 = xla_tuple %s21, %s22
  %s24 = sld [smem:[#allocation0]]
  $region102: #{tpu_custom_call.1} parent=0
    _
  %s26 = ssub.s32 1, %s24
  %s27 = scalar_select 0, %s26, %s24
  $region1: #{tpu_custom_call.1} parent=0
    #allocation2 [shape = 'u8[4096]{0}', space=vmem, size = 0x1000, scoped, tag = 'output window, operand 0, single buffered']
    #allocation3 [shape = 's32[1]{0}', space=sflag, size = 0x4, scoped, tag = 'scoped memory for tpu_custom_call.1']
    #allocation4 [shape = 'u8[4096]{0}', space=vmem, size = 0x1000, scoped, tag = 'output window, operand 1, single buffered']
    #allocation5 [shape = 's32[1]{0}', space=sflag, size = 0x4, scoped, tag = 'scoped memory for tpu_custom_call.1']
    %28 = vsyncpa [#allocation3], 0
    %29 = vsyncpa [#allocation5], 0
    // Predicated region
    $region2: #{tpu_custom_call.1} parent=1 // pred_check
      _
    $region3: #{tpu_custom_call.1} parent=1 // pred_check_branch
      %31 = sbr.rel (0) target = $region5
    $region4: #{tpu_custom_call.1} parent=1 // pred_region
      _
    $region5: #{tpu_custom_call.1} parent=1 // pred_fallthru
      _
    // Predicated region
    $region6: #{tpu_custom_call.1} parent=1 // pred_check
      _
    $region7: #{tpu_custom_call.1} parent=1 // pred_check_branch
      %33 = sbr.rel (0) target = $region9
    $region8: #{tpu_custom_call.1} parent=1 // pred_region
      _
    $region9: #{tpu_custom_call.1} parent=1 // pred_fallthru
      _
    // Predicated region
    $region10: #{tpu_custom_call.1} parent=1 // pred_check
      _
    $region11: #{tpu_custom_call.1} parent=1 // pred_check_branch
      %35 = sbr.rel (0) target = $region13
    $region12: #{tpu_custom_call.1} parent=1 // pred_region
      _
    $region13: #{tpu_custom_call.1} parent=1 // pred_fallthru
      _
    // Predicated region
    $region14: #{tpu_custom_call.1} parent=1 // pred_check
      _
    $region15: #{tpu_custom_call.1} parent=1 // pred_check_branch
      %37 = sbr.rel (0) target = $region17
    $region16: #{tpu_custom_call.1} parent=1 // pred_region
      _
    $region17: #{tpu_custom_call.1} parent=1 // pred_fallthru
      _
    // Predicated region
    $region18: #{tpu_custom_call.1} parent=1 // pred_check
      _
    $region19: #{tpu_custom_call.1} parent=1 // pred_check_branch
      %39 = sbr.rel (0) target = $region21
    $region20: #{tpu_custom_call.1} parent=1 // pred_region
      _
    $region21: #{tpu_custom_call.1} parent=1 // pred_fallthru
      _
    // Predicated region
    $region22: #{tpu_custom_call.1} parent=1 // pred_check
      _
    $region23: #{tpu_custom_call.1} parent=1 // pred_check_branch
      %41 = sbr.rel (0) target = $region25
    $region24: #{tpu_custom_call.1} parent=1 // pred_region
      _
    $region25: #{tpu_custom_call.1} parent=1 // pred_fallthru
      _
    // Predicated region
    $region26: #{tpu_custom_call.1} parent=1 // pred_check
      _
    $region27: #{tpu_custom_call.1} parent=1 // pred_check_branch
      %43 = sbr.rel (0) target = $region29
    $region28: #{tpu_custom_call.1} parent=1 // pred_region
      _
    $region29: #{tpu_custom_call.1} parent=1 // pred_fallthru
      _
    // Predicated region
    $region30: #{tpu_custom_call.1} parent=1 // pred_check
      _
    $region31: #{tpu_custom_call.1} parent=1 // pred_check_branch
      %45 = sbr.rel (0) target = $region33
    $region32: #{tpu_custom_call.1} parent=1 // pred_region
      _
    $region33: #{tpu_custom_call.1} parent=1 // pred_fallthru
      _
    // Predicated region
    $region34: #{tpu_custom_call.1} parent=1 // pred_check
      _
    $region35: #{tpu_custom_call.1} parent=1 // pred_check_branch
      %47 = sbr.rel (0) target = $region37
    $region36: #{tpu_custom_call.1} parent=1 // pred_region
      _
    $region37: #{tpu_custom_call.1} parent=1 // pred_fallthru
      _
    // Predicated region
    $region38: #{tpu_custom_call.1} parent=1 // pred_check
      _
    $region39: #{tpu_custom_call.1} parent=1 // pred_check_branch
      %49 = sbr.rel (0) target = $region41
    $region40: #{tpu_custom_call.1} parent=1 // pred_region
      _
    $region41: #{tpu_custom_call.1} parent=1 // pred_fallthru
      _
    // Predicated region
    $region42: #{tpu_custom_call.1} parent=1 // pred_check
      _
    $region43: #{tpu_custom_call.1} parent=1 // pred_check_branch
      %51 = sbr.rel (0) target = $region45
    $region44: #{tpu_custom_call.1} parent=1 // pred_region
      _
    $region45: #{tpu_custom_call.1} parent=1 // pred_fallthru
      _
    // Predicated region
    $region46: #{tpu_custom_call.1} parent=1 // pred_check
      _
    $region47: #{tpu_custom_call.1} parent=1 // pred_check_branch
      %53 = sbr.rel (0) target = $region49
    $region48: #{tpu_custom_call.1} parent=1 // pred_region
      _
    $region49: #{tpu_custom_call.1} parent=1 // pred_fallthru
      _
    // Predicated region
    $region50: #{tpu_custom_call.1} parent=1 // pred_check
      _
    $region51: #{tpu_custom_call.1} parent=1 // pred_check_branch
      %55 = sbr.rel (0) target = $region53
    $region52: #{tpu_custom_call.1} parent=1 // pred_region
      _
    $region53: #{tpu_custom_call.1} parent=1 // pred_fallthru
      _
    // Predicated region
    $region54: #{tpu_custom_call.1} parent=1 // pred_check
      _
    $region55: #{tpu_custom_call.1} parent=1 // pred_check_branch
      %57 = sbr.rel (0) target = $region57
    $region56: #{tpu_custom_call.1} parent=1 // pred_region
      _
    $region57: #{tpu_custom_call.1} parent=1 // pred_fallthru
      _
    // Predicated region
    $region58: #{tpu_custom_call.1} parent=1 // pred_check
      _
    $region59: #{tpu_custom_call.1} parent=1 // pred_check_branch
      %59 = sbr.rel (0) target = $region61
    $region60: #{tpu_custom_call.1} parent=1 // pred_region
      _
    $region61: #{tpu_custom_call.1} parent=1 // pred_fallthru
      _
    // Predicated region
    $region62: #{tpu_custom_call.1} parent=1 // pred_check
      _
    $region63: #{tpu_custom_call.1} parent=1 // pred_check_branch
      %61 = sbr.rel (0) target = $region65
    $region64: #{tpu_custom_call.1} parent=1 // pred_region
      _
    $region65: #{tpu_custom_call.1} parent=1 // pred_fallthru
      _
    // Predicated region
    $region66: #{tpu_custom_call.1} parent=1 // pred_check
      _
    $region67: #{tpu_custom_call.1} parent=1 // pred_check_branch
      %63 = sbr.rel (0) target = $region69
    $region68: #{tpu_custom_call.1} parent=1 // pred_region
      _
    $region69: #{tpu_custom_call.1} parent=1 // pred_fallthru
      _
    // Predicated region
    $region70: #{tpu_custom_call.1} parent=1 // pred_check
      _
    $region71: #{tpu_custom_call.1} parent=1 // pred_check_branch
      %65 = sbr.rel (0) target = $region73
    $region72: #{tpu_custom_call.1} parent=1 // pred_region
      _
    $region73: #{tpu_custom_call.1} parent=1 // pred_fallthru
      _
    // Predicated region
    $region74: #{tpu_custom_call.1} parent=1 // pred_check
      _
    $region75: #{tpu_custom_call.1} parent=1 // pred_check_branch
      %67 = sbr.rel (0) target = $region77
    $region76: #{tpu_custom_call.1} parent=1 // pred_region
      _
    $region77: #{tpu_custom_call.1} parent=1 // pred_fallthru
      _
    // Predicated region
    $region78: #{tpu_custom_call.1} parent=1 // pred_check
      _
    $region79: #{tpu_custom_call.1} parent=1 // pred_check_branch
      %69 = sbr.rel (0) target = $region81
    $region80: #{tpu_custom_call.1} parent=1 // pred_region
      _
    $region81: #{tpu_custom_call.1} parent=1 // pred_fallthru
      _
    // Predicated region
    $region82: #{tpu_custom_call.1} parent=1 // pred_check
      _
    $region83: #{tpu_custom_call.1} parent=1 // pred_check_branch
      %71 = sbr.rel (0) target = $region85
    $region84: #{tpu_custom_call.1} parent=1 // pred_region
      _
    $region85: #{tpu_custom_call.1} parent=1 // pred_fallthru
      _
    %v72 = vld [vmem:[%s0] sm:$0xff]
    %v73 = vld [vmem:[%s2] sm:$0x1]
    %v74 = vld [vmem:[%s1] sm:$0xff]
    %v75 = vld [vmem:[%s1 + $0x8] sm:$0xff]
    %v76 = vld [vmem:[%s1 + $0x10] sm:$0xff]
    %v77 = vld [vmem:[%s1 + $0x18] sm:$0xff]
    %v78 = vld [vmem:[%s1 + $0x20] sm:$0xff]
    %v79 = vld [vmem:[%s1 + $0x28] sm:$0xff]
    %v80 = vld [vmem:[%s1 + $0x30] sm:$0xff]
    %v81 = vld [vmem:[%s1 + $0x38] sm:$0xff]
    %v83 = vlaneseq
    %v84 = vshrl.u32 %v83, 7
    %v85 = vsub.s32 0, %v84
    %v86 = vrot.slane %v73, %v85
    %vm88 = vcmask 523264
    %v90 = vsel %vm88, %v72, 0
    %92 = vmatprep.subr.mxu0 0.0
    %93 = vmatpush1.msra.mxu0 %v74
    %94 = vmatprep.subr.mxu0 0.0
    %95 = vmatpush1.msra.mxu0 %v75
    %96 = vmatprep.subr.mxu0 0.0
    %97 = vmatpush1.msra.mxu0 %v76
    %98 = vmatprep.subr.mxu0 0.0
    %99 = vmatpush1.msra.mxu0 %v77
    %100 = vmatprep.subr.mxu0 0.0
    %101 = vmatpush1.msra.mxu0 %v78
    %102 = vmatprep.subr.mxu0 0.0
    %103 = vmatpush1.msra.mxu0 %v79
    %104 = vmatprep.subr.mxu0 0.0
    %105 = vmatpush1.msra.mxu0 %v80
    %106 = vmatprep.subr.mxu0 0.0
    %107 = vmatpush1.msra.mxu0 %v81
    %108 = vmatprep.subr.mxu0 0.0
    %109 = vmatpush1.msra.mxu0 0.0
    %110 = vmatprep.subr.mxu0 0.0
    %111 = vmatpush1.msra.mxu0 0.0
    %112 = vmatprep.subr.mxu0 0.0
    %113 = vmatpush1.msra.mxu0 0.0
    %114 = vmatprep.subr.mxu0 0.0
    %115 = vmatpush1.msra.mxu0 0.0
    %116 = vmatprep.subr.mxu0 0.0
    %117 = vmatpush1.msra.mxu0 0.0
    %118 = vmatprep.subr.mxu0 0.0
    %119 = vmatpush1.msra.mxu0 0.0
    %120 = vmatprep.subr.mxu0 0.0
    %121 = vmatpush1.msra.mxu0 0.0
    %122 = vmatprep.subr.mxu0 0.0
    %123 = vmatpush1.msra.mxu0 0.0
    %124 = vmatprep.subr.mxu0 0.0
    %125 = vmatpush1.msra.mxu0 0.0
    %126 = vmatprep.subr.mxu0 0.0
    %127 = vmatpush1.msra.mxu0 0.0
    %128 = vmatprep.subr.mxu0 0.0
    %129 = vmatpush1.msra.mxu0 0.0
    %130 = vmatprep.subr.mxu0 0.0
    %131 = vmatpush1.msra.mxu0 0.0
    %132 = vmatprep.subr.mxu0 0.0
    %133 = vmatpush1.msra.mxu0 0.0
    %134 = vmatprep.subr.mxu0 0.0
    %135 = vmatpush1.msra.mxu0 0.0
    %136 = vmatprep.subr.mxu0 0.0
    %137 = vmatpush1.msra.mxu0 0.0
    %138 = vmatprep.subr.mxu0 0.0
    %139 = vmatpush1.msra.mxu0 0.0
    %140 = vmatprep.subr.mxu0 0.0
    %141 = vmatpush1.msra.mxu0 0.0
    %142 = vmatprep.subr.mxu0 0.0
    %143 = vmatpush1.msra.mxu0 0.0
    %144 = vmatprep.subr.mxu0 0.0
    %145 = vmatpush1.msra.mxu0 0.0
    %146 = vmatprep.subr.mxu0 0.0
    %147 = vmatpush1.msra.mxu0 0.0
    %148 = vmatprep.subr.mxu0 0.0
    %149 = vmatpush1.msra.mxu0 0.0
    %150 = vmatprep.subr.mxu0 0.0
    %151 = vmatpush1.msra.mxu0 0.0
    %152 = vmatprep.subr.mxu0 0.0
    %153 = vmatpush1.msra.mxu0 0.0
    %154 = vmatprep.subr.mxu0 0.0
    %155 = vmatpush1.msra.mxu0 0.0
    %156 = vmatprep.mubr.f32.mxu0 0.0
    %157 = vmatmul.mubr.f32.gmra.mrb[0].mxu0 %v90
    %v158 = vpop.f32.mrb[0].mxu0
    %v159 = vadd.f32 %v86, %v158
    %v160 = vpop.f32.mrb[0].mxu0
    %161 = vdwg.mxu0
    %v162 = vmax.f32 %v159, 0.0
    %v163 = vld [vmem:[%s4] sm:$0x1]
    %v164 = vld [vmem:[%s3] sm:$0xff]
    %v165 = vld [vmem:[%s3 + $0x8] sm:$0xff]
    %v166 = vld [vmem:[%s3 + $0x10] sm:$0xff]
    %v167 = vld [vmem:[%s3 + $0x18] sm:$0xff]
    %v168 = vld [vmem:[%s3 + $0x20] sm:$0xff]
    %v169 = vld [vmem:[%s3 + $0x28] sm:$0xff]
    %v170 = vld [vmem:[%s3 + $0x30] sm:$0xff]
    %v171 = vld [vmem:[%s3 + $0x38] sm:$0xff]
    %v172 = vld [vmem:[%s3 + $0x40] sm:$0xff]
    %v173 = vld [vmem:[%s3 + $0x48] sm:$0xff]
    %v174 = vld [vmem:[%s3 + $0x50] sm:$0xff]
    %v175 = vld [vmem:[%s3 + $0x58] sm:$0xff]
    %v176 = vld [vmem:[%s3 + $0x60] sm:$0xff]
    %v177 = vld [vmem:[%s3 + $0x68] sm:$0xff]
    %v178 = vld [vmem:[%s3 + $0x70] sm:$0xff]
    %v179 = vld [vmem:[%s3 + $0x78] sm:$0xff]
    %v181 = vlaneseq
    %v182 = vshrl.u32 %v181, 7
    %v183 = vsub.s32 0, %v182
    %v184 = vrot.slane %v163, %v183
    %186 = vmatprep.subr.mxu0 0.0
    %187 = vmatpush1.msra.mxu0 %v164
    %188 = vmatprep.subr.mxu0 0.0
    %189 = vmatpush1.msra.mxu0 %v165
    %190 = vmatprep.subr.mxu0 0.0
    %191 = vmatpush1.msra.mxu0 %v166
    %192 = vmatprep.subr.mxu0 0.0
    %193 = vmatpush1.msra.mxu0 %v167
    %194 = vmatprep.subr.mxu0 0.0
    %195 = vmatpush1.msra.mxu0 %v168
    %196 = vmatprep.subr.mxu0 0.0
    %197 = vmatpush1.msra.mxu0 %v169
    %198 = vmatprep.subr.mxu0 0.0
    %199 = vmatpush1.msra.mxu0 %v170
    %200 = vmatprep.subr.mxu0 0.0
    %201 = vmatpush1.msra.mxu0 %v171
    %202 = vmatprep.subr.mxu0 0.0
    %203 = vmatpush1.msra.mxu0 %v172
    %204 = vmatprep.subr.mxu0 0.0
    %205 = vmatpush1.msra.mxu0 %v173
    %206 = vmatprep.subr.mxu0 0.0
    %207 = vmatpush1.msra.mxu0 %v174
    %208 = vmatprep.subr.mxu0 0.0
    %209 = vmatpush1.msra.mxu0 %v175
    %210 = vmatprep.subr.mxu0 0.0
    %211 = vmatpush1.msra.mxu0 %v176
    %212 = vmatprep.subr.mxu0 0.0
    %213 = vmatpush1.msra.mxu0 %v177
    %214 = vmatprep.subr.mxu0 0.0
    %215 = vmatpush1.msra.mxu0 %v178
    %216 = vmatprep.subr.mxu0 0.0
    %217 = vmatpush1.msra.mxu0 %v179
    %218 = vmatprep.subr.mxu0 0.0
    %219 = vmatpush1.msra.mxu0 0.0
    %220 = vmatprep.subr.mxu0 0.0
    %221 = vmatpush1.msra.mxu0 0.0
    %222 = vmatprep.subr.mxu0 0.0
    %223 = vmatpush1.msra.mxu0 0.0
    %224 = vmatprep.subr.mxu0 0.0
    %225 = vmatpush1.msra.mxu0 0.0
    %226 = vmatprep.subr.mxu0 0.0
    %227 = vmatpush1.msra.mxu0 0.0
    %228 = vmatprep.subr.mxu0 0.0
    %229 = vmatpush1.msra.mxu0 0.0
    %230 = vmatprep.subr.mxu0 0.0
    %231 = vmatpush1.msra.mxu0 0.0
    %232 = vmatprep.subr.mxu0 0.0
    %233 = vmatpush1.msra.mxu0 0.0
    %234 = vmatprep.subr.mxu0 0.0
    %235 = vmatpush1.msra.mxu0 0.0
    %236 = vmatprep.subr.mxu0 0.0
    %237 = vmatpush1.msra.mxu0 0.0
    %238 = vmatprep.subr.mxu0 0.0
    %239 = vmatpush1.msra.mxu0 0.0
    %240 = vmatprep.subr.mxu0 0.0
    %241 = vmatpush1.msra.mxu0 0.0
    %242 = vmatprep.subr.mxu0 0.0
    %243 = vmatpush1.msra.mxu0 0.0
    %244 = vmatprep.subr.mxu0 0.0
    %245 = vmatpush1.msra.mxu0 0.0
    %246 = vmatprep.subr.mxu0 0.0
    %247 = vmatpush1.msra.mxu0 0.0
    %248 = vmatprep.subr.mxu0 0.0
    %249 = vmatpush1.msra.mxu0 0.0
    %250 = vmatprep.mubr.f32.mxu0 0.0
    %251 = vmatmul.mubr.f32.gmra.mrb[0].mxu0 %v162
    %v252 = vpop.f32.mrb[0].mxu0
    %v253 = vadd.f32 %v184, %v252
    %v254 = vpop.f32.mrb[0].mxu0
    %255 = vdwg.mxu0
    %v256 = vmul.f32 %v253, %v162
    %v257 = vld [vmem:[%s6] sm:$0x1]
    %v258 = vld [vmem:[%s5] sm:$0xff]
    %v259 = vld [vmem:[%s5 + $0x8] sm:$0xff]
    %v260 = vld [vmem:[%s5 + $0x10] sm:$0xff]
    %v261 = vld [vmem:[%s5 + $0x18] sm:$0xff]
    %v262 = vld [vmem:[%s5 + $0x20] sm:$0xff]
    %v263 = vld [vmem:[%s5 + $0x28] sm:$0xff]
    %v264 = vld [vmem:[%s5 + $0x30] sm:$0xff]
    %v265 = vld [vmem:[%s5 + $0x38] sm:$0xff]
    %v266 = vld [vmem:[%s5 + $0x40] sm:$0xff]
    %v267 = vld [vmem:[%s5 + $0x48] sm:$0xff]
    %v268 = vld [vmem:[%s5 + $0x50] sm:$0xff]
    %v269 = vld [vmem:[%s5 + $0x58] sm:$0xff]
    %v270 = vld [vmem:[%s5 + $0x60] sm:$0xff]
    %v271 = vld [vmem:[%s5 + $0x68] sm:$0xff]
    %v272 = vld [vmem:[%s5 + $0x70] sm:$0xff]
    %v273 = vld [vmem:[%s5 + $0x78] sm:$0xff]
    %v274 = vld [vmem:[%s5 + $0x80] sm:$0xff]
    %v275 = vld [vmem:[%s5 + $0x88] sm:$0xff]
    %v276 = vld [vmem:[%s5 + $0x90] sm:$0xff]
    %v277 = vld [vmem:[%s5 + $0x98] sm:$0xff]
    %v278 = vld [vmem:[%s5 + $0xa0] sm:$0xff]
    %v279 = vld [vmem:[%s5 + $0xa8] sm:$0xff]
    %v280 = vld [vmem:[%s5 + $0xb0] sm:$0xff]
    %v281 = vld [vmem:[%s5 + $0xb8] sm:$0xff]
    %v282 = vld [vmem:[%s5 + $0xc0] sm:$0xff]
    %v283 = vld [vmem:[%s5 + $0xc8] sm:$0xff]
    %v284 = vld [vmem:[%s5 + $0xd0] sm:$0xff]
    %v285 = vld [vmem:[%s5 + $0xd8] sm:$0xff]
    %v286 = vld [vmem:[%s5 + $0xe0] sm:$0xff]
    %v287 = vld [vmem:[%s5 + $0xe8] sm:$0xff]
    %v288 = vld [vmem:[%s5 + $0xf0] sm:$0xff]
    %v289 = vld [vmem:[%s5 + $0xf8] sm:$0xff]
    %290 = vmatprep.subr.mxu0 0.0
    %291 = vmatpush1.msra.mxu0 %v274
    %292 = vmatprep.subr.mxu0 0.0
    %293 = vmatpush1.msra.mxu0 %v275
    %294 = vmatprep.subr.mxu0 0.0
    %295 = vmatpush1.msra.mxu0 %v276
    %296 = vmatprep.subr.mxu0 0.0
    %297 = vmatpush1.msra.mxu0 %v277
    %298 = vmatprep.subr.mxu0 0.0
    %299 = vmatpush1.msra.mxu0 %v278
    %300 = vmatprep.subr.mxu0 0.0
    %301 = vmatpush1.msra.mxu0 %v279
    %302 = vmatprep.subr.mxu0 0.0
    %303 = vmatpush1.msra.mxu0 %v280
    %304 = vmatprep.subr.mxu0 0.0
    %305 = vmatpush1.msra.mxu0 %v281
    %306 = vmatprep.subr.mxu0 0.0
    %307 = vmatpush1.msra.mxu0 %v282
    %308 = vmatprep.subr.mxu0 0.0
    %309 = vmatpush1.msra.mxu0 %v283
    %310 = vmatprep.subr.mxu0 0.0
    %311 = vmatpush1.msra.mxu0 %v284
    %312 = vmatprep.subr.mxu0 0.0
    %313 = vmatpush1.msra.mxu0 %v285
    %314 = vmatprep.subr.mxu0 0.0
    %315 = vmatpush1.msra.mxu0 %v286
    %316 = vmatprep.subr.mxu0 0.0
    %317 = vmatpush1.msra.mxu0 %v287
    %318 = vmatprep.subr.mxu0 0.0
    %319 = vmatpush1.msra.mxu0 %v288
    %320 = vmatprep.subr.mxu0 0.0
    %321 = vmatpush1.msra.mxu0 %v289
    %322 = vmatprep.subr.mxu0 0.0
    %323 = vmatpush1.msra.mxu0 0.0
    %324 = vmatprep.subr.mxu0 0.0
    %325 = vmatpush1.msra.mxu0 0.0
    %326 = vmatprep.subr.mxu0 0.0
    %327 = vmatpush1.msra.mxu0 0.0
    %328 = vmatprep.subr.mxu0 0.0
    %329 = vmatpush1.msra.mxu0 0.0
    %330 = vmatprep.subr.mxu0 0.0
    %331 = vmatpush1.msra.mxu0 0.0
    %332 = vmatprep.subr.mxu0 0.0
    %333 = vmatpush1.msra.mxu0 0.0
    %334 = vmatprep.subr.mxu0 0.0
    %335 = vmatpush1.msra.mxu0 0.0
    %336 = vmatprep.subr.mxu0 0.0
    %337 = vmatpush1.msra.mxu0 0.0
    %338 = vmatprep.subr.mxu0 0.0
    %339 = vmatpush1.msra.mxu0 0.0
    %340 = vmatprep.subr.mxu0 0.0
    %341 = vmatpush1.msra.mxu0 0.0
    %342 = vmatprep.subr.mxu0 0.0
    %343 = vmatpush1.msra.mxu0 0.0
    %344 = vmatprep.subr.mxu0 0.0
    %345 = vmatpush1.msra.mxu0 0.0
    %346 = vmatprep.subr.mxu0 0.0
    %347 = vmatpush1.msra.mxu0 0.0
    %348 = vmatprep.subr.mxu0 0.0
    %349 = vmatpush1.msra.mxu0 0.0
    %350 = vmatprep.subr.mxu0 0.0
    %351 = vmatpush1.msra.mxu0 0.0
    %352 = vmatprep.subr.mxu0 0.0
    %353 = vmatpush1.msra.mxu0 0.0
    %354 = vmatprep.mubr.f32.mxu0 0.0
    %355 = vmatmul.mubr.f32.gmra.mrb[0].mxu0 %v256
    %v356 = vpop.f32.mrb[0].mxu0
    %v357 = vadd.f32 0.0, %v356
    %v358 = vpop.f32.mrb[0].mxu0
    %359 = vdwg.mxu0
    %360 = vmatprep.subr.mxu0 0.0
    %361 = vmatpush1.msra.mxu0 %v258
    %362 = vmatprep.subr.mxu0 0.0
    %363 = vmatpush1.msra.mxu0 %v259
    %364 = vmatprep.subr.mxu0 0.0
    %365 = vmatpush1.msra.mxu0 %v260
    %366 = vmatprep.subr.mxu0 0.0
    %367 = vmatpush1.msra.mxu0 %v261
    %368 = vmatprep.subr.mxu0 0.0
    %369 = vmatpush1.msra.mxu0 %v262
    %370 = vmatprep.subr.mxu0 0.0
    %371 = vmatpush1.msra.mxu0 %v263
    %372 = vmatprep.subr.mxu0 0.0
    %373 = vmatpush1.msra.mxu0 %v264
    %374 = vmatprep.subr.mxu0 0.0
    %375 = vmatpush1.msra.mxu0 %v265
    %376 = vmatprep.subr.mxu0 0.0
    %377 = vmatpush1.msra.mxu0 %v266
    %378 = vmatprep.subr.mxu0 0.0
    %379 = vmatpush1.msra.mxu0 %v267
    %380 = vmatprep.subr.mxu0 0.0
    %381 = vmatpush1.msra.mxu0 %v268
    %382 = vmatprep.subr.mxu0 0.0
    %383 = vmatpush1.msra.mxu0 %v269
    %384 = vmatprep.subr.mxu0 0.0
    %385 = vmatpush1.msra.mxu0 %v270
    %386 = vmatprep.subr.mxu0 0.0
    %387 = vmatpush1.msra.mxu0 %v271
    %388 = vmatprep.subr.mxu0 0.0
    %389 = vmatpush1.msra.mxu0 %v272
    %390 = vmatprep.subr.mxu0 0.0
    %391 = vmatpush1.msra.mxu0 %v273
    %392 = vmatprep.subr.mxu0 0.0
    %393 = vmatpush1.msra.mxu0 0.0
    %394 = vmatprep.subr.mxu0 0.0
    %395 = vmatpush1.msra.mxu0 0.0
    %396 = vmatprep.subr.mxu0 0.0
    %397 = vmatpush1.msra.mxu0 0.0
    %398 = vmatprep.subr.mxu0 0.0
    %399 = vmatpush1.msra.mxu0 0.0
    %400 = vmatprep.subr.mxu0 0.0
    %401 = vmatpush1.msra.mxu0 0.0
    %402 = vmatprep.subr.mxu0 0.0
    %403 = vmatpush1.msra.mxu0 0.0
    %404 = vmatprep.subr.mxu0 0.0
    %405 = vmatpush1.msra.mxu0 0.0
    %406 = vmatprep.subr.mxu0 0.0
    %407 = vmatpush1.msra.mxu0 0.0
    %408 = vmatprep.subr.mxu0 0.0
    %409 = vmatpush1.msra.mxu0 0.0
    %410 = vmatprep.subr.mxu0 0.0
    %411 = vmatpush1.msra.mxu0 0.0
    %412 = vmatprep.subr.mxu0 0.0
    %413 = vmatpush1.msra.mxu0 0.0
    %414 = vmatprep.subr.mxu0 0.0
    %415 = vmatpush1.msra.mxu0 0.0
    %416 = vmatprep.subr.mxu0 0.0
    %417 = vmatpush1.msra.mxu0 0.0
    %418 = vmatprep.subr.mxu0 0.0
    %419 = vmatpush1.msra.mxu0 0.0
    %420 = vmatprep.subr.mxu0 0.0
    %421 = vmatpush1.msra.mxu0 0.0
    %422 = vmatprep.subr.mxu0 0.0
    %423 = vmatpush1.msra.mxu0 0.0
    %424 = vmatprep.mubr.f32.mxu0 0.0
    %425 = vmatmul.mubr.f32.gmra.mrb[0].mxu0 %v162
    %v426 = vpop.f32.mrb[0].mxu0
    %v427 = vadd.f32 %v357, %v426
    %v428 = vpop.f32.mrb[0].mxu0
    %429 = vdwg.mxu0
    %v431 = vlaneseq
    %v432 = vshrl.u32 %v431, 7
    %v433 = vsub.s32 0, %v432
    %v434 = vrot.slane %v257, %v433
    %v436 = vadd.f32 %v427, %v434
    %v437 = vmax.f32 %v436, 0.0
    %v438 = vld [vmem:[%s8] sm:$0x1]
    %v439 = vld [vmem:[%s7] sm:$0xff]
    %v440 = vld [vmem:[%s7 + $0x8] sm:$0xff]
    %v441 = vld [vmem:[%s7 + $0x10] sm:$0xff]
    %v442 = vld [vmem:[%s7 + $0x18] sm:$0xff]
    %v443 = vld [vmem:[%s7 + $0x20] sm:$0xff]
    %v444 = vld [vmem:[%s7 + $0x28] sm:$0xff]
    %v445 = vld [vmem:[%s7 + $0x30] sm:$0xff]
    %v446 = vld [vmem:[%s7 + $0x38] sm:$0xff]
    %v448 = vlaneseq
    %v449 = vshrl.u32 %v448, 7
    %v450 = vsub.s32 0, %v449
    %v451 = vrot.slane %v438, %v450
    %v454 = vsel %vm88, %v437, 0
    %456 = vmatprep.subr.mxu0 0.0
    %457 = vmatpush1.msra.mxu0 %v439
    %458 = vmatprep.subr.mxu0 0.0
    %459 = vmatpush1.msra.mxu0 %v440
    %460 = vmatprep.subr.mxu0 0.0
    %461 = vmatpush1.msra.mxu0 %v441
    %462 = vmatprep.subr.mxu0 0.0
    %463 = vmatpush1.msra.mxu0 %v442
    %464 = vmatprep.subr.mxu0 0.0
    %465 = vmatpush1.msra.mxu0 %v443
    %466 = vmatprep.subr.mxu0 0.0
    %467 = vmatpush1.msra.mxu0 %v444
    %468 = vmatprep.subr.mxu0 0.0
    %469 = vmatpush1.msra.mxu0 %v445
    %470 = vmatprep.subr.mxu0 0.0
    %471 = vmatpush1.msra.mxu0 %v446
    %472 = vmatprep.subr.mxu0 0.0
    %473 = vmatpush1.msra.mxu0 0.0
    %474 = vmatprep.subr.mxu0 0.0
    %475 = vmatpush1.msra.mxu0 0.0
    %476 = vmatprep.subr.mxu0 0.0
    %477 = vmatpush1.msra.mxu0 0.0
    %478 = vmatprep.subr.mxu0 0.0
    %479 = vmatpush1.msra.mxu0 0.0
    %480 = vmatprep.subr.mxu0 0.0
    %481 = vmatpush1.msra.mxu0 0.0
    %482 = vmatprep.subr.mxu0 0.0
    %483 = vmatpush1.msra.mxu0 0.0
    %484 = vmatprep.subr.mxu0 0.0
    %485 = vmatpush1.msra.mxu0 0.0
    %486 = vmatprep.subr.mxu0 0.0
    %487 = vmatpush1.msra.mxu0 0.0
    %488 = vmatprep.subr.mxu0 0.0
    %489 = vmatpush1.msra.mxu0 0.0
    %490 = vmatprep.subr.mxu0 0.0
    %491 = vmatpush1.msra.mxu0 0.0
    %492 = vmatprep.subr.mxu0 0.0
    %493 = vmatpush1.msra.mxu0 0.0
    %494 = vmatprep.subr.mxu0 0.0
    %495 = vmatpush1.msra.mxu0 0.0
    %496 = vmatprep.subr.mxu0 0.0
    %497 = vmatpush1.msra.mxu0 0.0
    %498 = vmatprep.subr.mxu0 0.0
    %499 = vmatpush1.msra.mxu0 0.0
    %500 = vmatprep.subr.mxu0 0.0
    %501 = vmatpush1.msra.mxu0 0.0
    %502 = vmatprep.subr.mxu0 0.0
    %503 = vmatpush1.msra.mxu0 0.0
    %504 = vmatprep.subr.mxu0 0.0
    %505 = vmatpush1.msra.mxu0 0.0
    %506 = vmatprep.subr.mxu0 0.0
    %507 = vmatpush1.msra.mxu0 0.0
    %508 = vmatprep.subr.mxu0 0.0
    %509 = vmatpush1.msra.mxu0 0.0
    %510 = vmatprep.subr.mxu0 0.0
    %511 = vmatpush1.msra.mxu0 0.0
    %512 = vmatprep.subr.mxu0 0.0
    %513 = vmatpush1.msra.mxu0 0.0
    %514 = vmatprep.subr.mxu0 0.0
    %515 = vmatpush1.msra.mxu0 0.0
    %516 = vmatprep.subr.mxu0 0.0
    %517 = vmatpush1.msra.mxu0 0.0
    %518 = vmatprep.subr.mxu0 0.0
    %519 = vmatpush1.msra.mxu0 0.0
    %520 = vmatprep.mubr.f32.mxu0 0.0
    %521 = vmatmul.mubr.f32.gmra.mrb[0].mxu0 %v454
    %v522 = vpop.f32.mrb[0].mxu0
    %v523 = vadd.f32 %v451, %v522
    %v524 = vpop.f32.mrb[0].mxu0
    %525 = vdwg.mxu0
    %v526 = vmax.f32 %v523, 0.0
    %v527 = vld [vmem:[%s10] sm:$0x1]
    %v528 = vld [vmem:[%s9] sm:$0xff]
    %v529 = vld [vmem:[%s9 + $0x8] sm:$0xff]
    %v530 = vld [vmem:[%s9 + $0x10] sm:$0xff]
    %v531 = vld [vmem:[%s9 + $0x18] sm:$0xff]
    %v533 = vlaneseq
    %v534 = vshrl.u32 %v533, 7
    %v535 = vsub.s32 0, %v534
    %v536 = vrot.slane %v527, %v535
    %vm538 = vcmask 261120
    %v540 = vsel %vm538, %v526, 0
    %542 = vmatprep.subr.mxu0 0.0
    %543 = vmatpush1.msra.mxu0 %v528
    %544 = vmatprep.subr.mxu0 0.0
    %545 = vmatpush1.msra.mxu0 %v529
    %546 = vmatprep.subr.mxu0 0.0
    %547 = vmatpush1.msra.mxu0 %v530
    %548 = vmatprep.subr.mxu0 0.0
    %549 = vmatpush1.msra.mxu0 %v531
    %550 = vmatprep.subr.mxu0 0.0
    %551 = vmatpush1.msra.mxu0 0.0
    %552 = vmatprep.subr.mxu0 0.0
    %553 = vmatpush1.msra.mxu0 0.0
    %554 = vmatprep.subr.mxu0 0.0
    %555 = vmatpush1.msra.mxu0 0.0
    %556 = vmatprep.subr.mxu0 0.0
    %557 = vmatpush1.msra.mxu0 0.0
    %558 = vmatprep.subr.mxu0 0.0
    %559 = vmatpush1.msra.mxu0 0.0
    %560 = vmatprep.subr.mxu0 0.0
    %561 = vmatpush1.msra.mxu0 0.0
    %562 = vmatprep.subr.mxu0 0.0
    %563 = vmatpush1.msra.mxu0 0.0
    %564 = vmatprep.subr.mxu0 0.0
    %565 = vmatpush1.msra.mxu0 0.0
    %566 = vmatprep.subr.mxu0 0.0
    %567 = vmatpush1.msra.mxu0 0.0
    %568 = vmatprep.subr.mxu0 0.0
    %569 = vmatpush1.msra.mxu0 0.0
    %570 = vmatprep.subr.mxu0 0.0
    %571 = vmatpush1.msra.mxu0 0.0
    %572 = vmatprep.subr.mxu0 0.0
    %573 = vmatpush1.msra.mxu0 0.0
    %574 = vmatprep.subr.mxu0 0.0
    %575 = vmatpush1.msra.mxu0 0.0
    %576 = vmatprep.subr.mxu0 0.0
    %577 = vmatpush1.msra.mxu0 0.0
    %578 = vmatprep.subr.mxu0 0.0
    %579 = vmatpush1.msra.mxu0 0.0
    %580 = vmatprep.subr.mxu0 0.0
    %581 = vmatpush1.msra.mxu0 0.0
    %582 = vmatprep.subr.mxu0 0.0
    %583 = vmatpush1.msra.mxu0 0.0
    %584 = vmatprep.subr.mxu0 0.0
    %585 = vmatpush1.msra.mxu0 0.0
    %586 = vmatprep.subr.mxu0 0.0
    %587 = vmatpush1.msra.mxu0 0.0
    %588 = vmatprep.subr.mxu0 0.0
    %589 = vmatpush1.msra.mxu0 0.0
    %590 = vmatprep.subr.mxu0 0.0
    %591 = vmatpush1.msra.mxu0 0.0
    %592 = vmatprep.subr.mxu0 0.0
    %593 = vmatpush1.msra.mxu0 0.0
    %594 = vmatprep.subr.mxu0 0.0
    %595 = vmatpush1.msra.mxu0 0.0
    %596 = vmatprep.subr.mxu0 0.0
    %597 = vmatpush1.msra.mxu0 0.0
    %598 = vmatprep.subr.mxu0 0.0
    %599 = vmatpush1.msra.mxu0 0.0
    %600 = vmatprep.subr.mxu0 0.0
    %601 = vmatpush1.msra.mxu0 0.0
    %602 = vmatprep.subr.mxu0 0.0
    %603 = vmatpush1.msra.mxu0 0.0
    %604 = vmatprep.subr.mxu0 0.0
    %605 = vmatpush1.msra.mxu0 0.0
    %606 = vmatprep.mubr.f32.mxu0 0.0
    %607 = vmatmul.mubr.f32.gmra.mrb[0].mxu0 %v540
    %v608 = vpop.f32.mrb[0].mxu0
    %v609 = vadd.f32 %v536, %v608
    %v610 = vpop.f32.mrb[0].mxu0
    %611 = vdwg.mxu0
    %v612 = vld [vmem:[%s12] sm:$0x1]
    %v613 = vld [vmem:[%s11] sm:$0xff]
    %v614 = vld [vmem:[%s11 + $0x8] sm:$0xff]
    %v615 = vld [vmem:[%s11 + $0x10] sm:$0xff]
    %v616 = vld [vmem:[%s11 + $0x18] sm:$0xff]
    %v618 = vlaneseq
    %v619 = vshrl.u32 %v618, 7
    %v620 = vsub.s32 0, %v619
    %v621 = vrot.slane %v612, %v620
    %v624 = vsel %vm538, %v609, 0
    %626 = vmatprep.subr.mxu0 0.0
    %627 = vmatpush1.msra.mxu0 %v613
    %628 = vmatprep.subr.mxu0 0.0
    %629 = vmatpush1.msra.mxu0 %v614
    %630 = vmatprep.subr.mxu0 0.0
    %631 = vmatpush1.msra.mxu0 %v615
    %632 = vmatprep.subr.mxu0 0.0
    %633 = vmatpush1.msra.mxu0 %v616
    %634 = vmatprep.subr.mxu0 0.0
    %635 = vmatpush1.msra.mxu0 0.0
    %636 = vmatprep.subr.mxu0 0.0
    %637 = vmatpush1.msra.mxu0 0.0
    %638 = vmatprep.subr.mxu0 0.0
    %639 = vmatpush1.msra.mxu0 0.0
    %640 = vmatprep.subr.mxu0 0.0
    %641 = vmatpush1.msra.mxu0 0.0
    %642 = vmatprep.subr.mxu0 0.0
    %643 = vmatpush1.msra.mxu0 0.0
    %644 = vmatprep.subr.mxu0 0.0
    %645 = vmatpush1.msra.mxu0 0.0
    %646 = vmatprep.subr.mxu0 0.0
    %647 = vmatpush1.msra.mxu0 0.0
    %648 = vmatprep.subr.mxu0 0.0
    %649 = vmatpush1.msra.mxu0 0.0
    %650 = vmatprep.subr.mxu0 0.0
    %651 = vmatpush1.msra.mxu0 0.0
    %652 = vmatprep.subr.mxu0 0.0
    %653 = vmatpush1.msra.mxu0 0.0
    %654 = vmatprep.subr.mxu0 0.0
    %655 = vmatpush1.msra.mxu0 0.0
    %656 = vmatprep.subr.mxu0 0.0
    %657 = vmatpush1.msra.mxu0 0.0
    %658 = vmatprep.subr.mxu0 0.0
    %659 = vmatpush1.msra.mxu0 0.0
    %660 = vmatprep.subr.mxu0 0.0
    %661 = vmatpush1.msra.mxu0 0.0
    %662 = vmatprep.subr.mxu0 0.0
    %663 = vmatpush1.msra.mxu0 0.0
    %664 = vmatprep.subr.mxu0 0.0
    %665 = vmatpush1.msra.mxu0 0.0
    %666 = vmatprep.subr.mxu0 0.0
    %667 = vmatpush1.msra.mxu0 0.0
    %668 = vmatprep.subr.mxu0 0.0
    %669 = vmatpush1.msra.mxu0 0.0
    %670 = vmatprep.subr.mxu0 0.0
    %671 = vmatpush1.msra.mxu0 0.0
    %672 = vmatprep.subr.mxu0 0.0
    %673 = vmatpush1.msra.mxu0 0.0
    %674 = vmatprep.subr.mxu0 0.0
    %675 = vmatpush1.msra.mxu0 0.0
    %676 = vmatprep.subr.mxu0 0.0
    %677 = vmatpush1.msra.mxu0 0.0
    %678 = vmatprep.subr.mxu0 0.0
    %679 = vmatpush1.msra.mxu0 0.0
    %680 = vmatprep.subr.mxu0 0.0
    %681 = vmatpush1.msra.mxu0 0.0
    %682 = vmatprep.subr.mxu0 0.0
    %683 = vmatpush1.msra.mxu0 0.0
    %684 = vmatprep.subr.mxu0 0.0
    %685 = vmatpush1.msra.mxu0 0.0
    %686 = vmatprep.subr.mxu0 0.0
    %687 = vmatpush1.msra.mxu0 0.0
    %688 = vmatprep.subr.mxu0 0.0
    %689 = vmatpush1.msra.mxu0 0.0
    %690 = vmatprep.mubr.f32.mxu0 0.0
    %691 = vmatmul.mubr.f32.gmra.mrb[0].mxu0 %v624
    %v692 = vpop.f32.mrb[0].mxu0
    %v693 = vadd.f32 %v621, %v692
    %v694 = vpop.f32.mrb[0].mxu0
    %695 = vdwg.mxu0
    %v696 = vmax.f32 %v693, 0.0
    %v697 = vld [vmem:[%s14] sm:$0x1]
    %v698 = vld [vmem:[%s13] sm:$0xff]
    %v699 = vld [vmem:[%s13 + $0x8] sm:$0xff]
    %v700 = vld [vmem:[%s13 + $0x10] sm:$0xff]
    %v701 = vld [vmem:[%s13 + $0x18] sm:$0xff]
    %v703 = vlaneseq
    %v704 = vshrl.u32 %v703, 7
    %v705 = vsub.s32 0, %v704
    %v706 = vrot.slane %v697, %v705
    %v709 = vsel %vm538, %v696, 0
    %711 = vmatprep.subr.mxu0 0.0
    %712 = vmatpush1.msra.mxu0 %v698
    %713 = vmatprep.subr.mxu0 0.0
    %714 = vmatpush1.msra.mxu0 %v699
    %715 = vmatprep.subr.mxu0 0.0
    %716 = vmatpush1.msra.mxu0 %v700
    %717 = vmatprep.subr.mxu0 0.0
    %718 = vmatpush1.msra.mxu0 %v701
    %719 = vmatprep.subr.mxu0 0.0
    %720 = vmatpush1.msra.mxu0 0.0
    %721 = vmatprep.subr.mxu0 0.0
    %722 = vmatpush1.msra.mxu0 0.0
    %723 = vmatprep.subr.mxu0 0.0
    %724 = vmatpush1.msra.mxu0 0.0
    %725 = vmatprep.subr.mxu0 0.0
    %726 = vmatpush1.msra.mxu0 0.0
    %727 = vmatprep.subr.mxu0 0.0
    %728 = vmatpush1.msra.mxu0 0.0
    %729 = vmatprep.subr.mxu0 0.0
    %730 = vmatpush1.msra.mxu0 0.0
    %731 = vmatprep.subr.mxu0 0.0
    %732 = vmatpush1.msra.mxu0 0.0
    %733 = vmatprep.subr.mxu0 0.0
    %734 = vmatpush1.msra.mxu0 0.0
    %735 = vmatprep.subr.mxu0 0.0
    %736 = vmatpush1.msra.mxu0 0.0
    %737 = vmatprep.subr.mxu0 0.0
    %738 = vmatpush1.msra.mxu0 0.0
    %739 = vmatprep.subr.mxu0 0.0
    %740 = vmatpush1.msra.mxu0 0.0
    %741 = vmatprep.subr.mxu0 0.0
    %742 = vmatpush1.msra.mxu0 0.0
    %743 = vmatprep.subr.mxu0 0.0
    %744 = vmatpush1.msra.mxu0 0.0
    %745 = vmatprep.subr.mxu0 0.0
    %746 = vmatpush1.msra.mxu0 0.0
    %747 = vmatprep.subr.mxu0 0.0
    %748 = vmatpush1.msra.mxu0 0.0
    %749 = vmatprep.subr.mxu0 0.0
    %750 = vmatpush1.msra.mxu0 0.0
    %751 = vmatprep.subr.mxu0 0.0
    %752 = vmatpush1.msra.mxu0 0.0
    %753 = vmatprep.subr.mxu0 0.0
    %754 = vmatpush1.msra.mxu0 0.0
    %755 = vmatprep.subr.mxu0 0.0
    %756 = vmatpush1.msra.mxu0 0.0
    %757 = vmatprep.subr.mxu0 0.0
    %758 = vmatpush1.msra.mxu0 0.0
    %759 = vmatprep.subr.mxu0 0.0
    %760 = vmatpush1.msra.mxu0 0.0
    %761 = vmatprep.subr.mxu0 0.0
    %762 = vmatpush1.msra.mxu0 0.0
    %763 = vmatprep.subr.mxu0 0.0
    %764 = vmatpush1.msra.mxu0 0.0
    %765 = vmatprep.subr.mxu0 0.0
    %766 = vmatpush1.msra.mxu0 0.0
    %767 = vmatprep.subr.mxu0 0.0
    %768 = vmatpush1.msra.mxu0 0.0
    %769 = vmatprep.subr.mxu0 0.0
    %770 = vmatpush1.msra.mxu0 0.0
    %771 = vmatprep.subr.mxu0 0.0
    %772 = vmatpush1.msra.mxu0 0.0
    %773 = vmatprep.subr.mxu0 0.0
    %774 = vmatpush1.msra.mxu0 0.0
    %775 = vmatprep.mubr.f32.mxu0 0.0
    %776 = vmatmul.mubr.f32.gmra.mrb[0].mxu0 %v709
    %v777 = vpop.f32.mrb[0].mxu0
    %v778 = vadd.f32 %v706, %v777
    %v779 = vpop.f32.mrb[0].mxu0
    %780 = vdwg.mxu0
    %v781 = vmax.f32 %v778, 0.0
    %v782 = vld [vmem:[%s16] sm:$0x1]
    %v783 = vld [vmem:[%s15] sm:$0xff]
    %v784 = vld [vmem:[%s15 + $0x8] sm:$0xff]
    %v785 = vld [vmem:[%s15 + $0x10] sm:$0xff]
    %v786 = vld [vmem:[%s15 + $0x18] sm:$0xff]
    %v787 = vld [vmem:[%s15 + $0x20] sm:$0xff]
    %v788 = vld [vmem:[%s15 + $0x28] sm:$0xff]
    %v789 = vld [vmem:[%s15 + $0x30] sm:$0xff]
    %v790 = vld [vmem:[%s15 + $0x38] sm:$0xff]
    %v792 = vlaneseq
    %v793 = vshrl.u32 %v792, 7
    %v794 = vsub.s32 0, %v793
    %v795 = vrot.slane %v782, %v794
    %v798 = vsel %vm88, %v781, 0
    %800 = vmatprep.subr.mxu0 0.0
    %801 = vmatpush1.msra.mxu0 %v783
    %802 = vmatprep.subr.mxu0 0.0
    %803 = vmatpush1.msra.mxu0 %v784
    %804 = vmatprep.subr.mxu0 0.0
    %805 = vmatpush1.msra.mxu0 %v785
    %806 = vmatprep.subr.mxu0 0.0
    %807 = vmatpush1.msra.mxu0 %v786
    %808 = vmatprep.subr.mxu0 0.0
    %809 = vmatpush1.msra.mxu0 %v787
    %810 = vmatprep.subr.mxu0 0.0
    %811 = vmatpush1.msra.mxu0 %v788
    %812 = vmatprep.subr.mxu0 0.0
    %813 = vmatpush1.msra.mxu0 %v789
    %814 = vmatprep.subr.mxu0 0.0
    %815 = vmatpush1.msra.mxu0 %v790
    %816 = vmatprep.subr.mxu0 0.0
    %817 = vmatpush1.msra.mxu0 0.0
    %818 = vmatprep.subr.mxu0 0.0
    %819 = vmatpush1.msra.mxu0 0.0
    %820 = vmatprep.subr.mxu0 0.0
    %821 = vmatpush1.msra.mxu0 0.0
    %822 = vmatprep.subr.mxu0 0.0
    %823 = vmatpush1.msra.mxu0 0.0
    %824 = vmatprep.subr.mxu0 0.0
    %825 = vmatpush1.msra.mxu0 0.0
    %826 = vmatprep.subr.mxu0 0.0
    %827 = vmatpush1.msra.mxu0 0.0
    %828 = vmatprep.subr.mxu0 0.0
    %829 = vmatpush1.msra.mxu0 0.0
    %830 = vmatprep.subr.mxu0 0.0
    %831 = vmatpush1.msra.mxu0 0.0
    %832 = vmatprep.subr.mxu0 0.0
    %833 = vmatpush1.msra.mxu0 0.0
    %834 = vmatprep.subr.mxu0 0.0
    %835 = vmatpush1.msra.mxu0 0.0
    %836 = vmatprep.subr.mxu0 0.0
    %837 = vmatpush1.msra.mxu0 0.0
    %838 = vmatprep.subr.mxu0 0.0
    %839 = vmatpush1.msra.mxu0 0.0
    %840 = vmatprep.subr.mxu0 0.0
    %841 = vmatpush1.msra.mxu0 0.0
    %842 = vmatprep.subr.mxu0 0.0
    %843 = vmatpush1.msra.mxu0 0.0
    %844 = vmatprep.subr.mxu0 0.0
    %845 = vmatpush1.msra.mxu0 0.0
    %846 = vmatprep.subr.mxu0 0.0
    %847 = vmatpush1.msra.mxu0 0.0
    %848 = vmatprep.subr.mxu0 0.0
    %849 = vmatpush1.msra.mxu0 0.0
    %850 = vmatprep.subr.mxu0 0.0
    %851 = vmatpush1.msra.mxu0 0.0
    %852 = vmatprep.subr.mxu0 0.0
    %853 = vmatpush1.msra.mxu0 0.0
    %854 = vmatprep.subr.mxu0 0.0
    %855 = vmatpush1.msra.mxu0 0.0
    %856 = vmatprep.subr.mxu0 0.0
    %857 = vmatpush1.msra.mxu0 0.0
    %858 = vmatprep.subr.mxu0 0.0
    %859 = vmatpush1.msra.mxu0 0.0
    %860 = vmatprep.subr.mxu0 0.0
    %861 = vmatpush1.msra.mxu0 0.0
    %862 = vmatprep.subr.mxu0 0.0
    %863 = vmatpush1.msra.mxu0 0.0
    %864 = vmatprep.mubr.f32.mxu0 0.0
    %865 = vmatmul.mubr.f32.gmra.mrb[0].mxu0 %v798
    %v866 = vpop.f32.mrb[0].mxu0
    %v867 = vadd.f32 %v795, %v866
    %v868 = vpop.f32.mrb[0].mxu0
    %869 = vdwg.mxu0
    %v870 = vmul.f32 %v867, %v781
    %v871 = vld [vmem:[%s18] sm:$0x1]
    %v872 = vld [vmem:[%s17] sm:$0xff]
    %v873 = vld [vmem:[%s17 + $0x8] sm:$0xff]
    %v874 = vld [vmem:[%s17 + $0x10] sm:$0xff]
    %v875 = vld [vmem:[%s17 + $0x18] sm:$0xff]
    %v876 = vld [vmem:[%s17 + $0x20] sm:$0xff]
    %v877 = vld [vmem:[%s17 + $0x28] sm:$0xff]
    %v878 = vld [vmem:[%s17 + $0x30] sm:$0xff]
    %v879 = vld [vmem:[%s17 + $0x38] sm:$0xff]
    %v880 = vld [vmem:[%s17 + $0x40] sm:$0xff]
    %v881 = vld [vmem:[%s17 + $0x48] sm:$0xff]
    %v882 = vld [vmem:[%s17 + $0x50] sm:$0xff]
    %v883 = vld [vmem:[%s17 + $0x58] sm:$0xff]
    %v884 = vld [vmem:[%s17 + $0x60] sm:$0xff]
    %v885 = vld [vmem:[%s17 + $0x68] sm:$0xff]
    %v886 = vld [vmem:[%s17 + $0x70] sm:$0xff]
    %v887 = vld [vmem:[%s17 + $0x78] sm:$0xff]
    %v889 = vsel %vm88, %v870, 0
    %891 = vmatprep.subr.mxu0 0.0
    %892 = vmatpush1.msra.mxu0 %v880
    %893 = vmatprep.subr.mxu0 0.0
    %894 = vmatpush1.msra.mxu0 %v881
    %895 = vmatprep.subr.mxu0 0.0
    %896 = vmatpush1.msra.mxu0 %v882
    %897 = vmatprep.subr.mxu0 0.0
    %898 = vmatpush1.msra.mxu0 %v883
    %899 = vmatprep.subr.mxu0 0.0
    %900 = vmatpush1.msra.mxu0 %v884
    %901 = vmatprep.subr.mxu0 0.0
    %902 = vmatpush1.msra.mxu0 %v885
    %903 = vmatprep.subr.mxu0 0.0
    %904 = vmatpush1.msra.mxu0 %v886
    %905 = vmatprep.subr.mxu0 0.0
    %906 = vmatpush1.msra.mxu0 %v887
    %907 = vmatprep.subr.mxu0 0.0
    %908 = vmatpush1.msra.mxu0 0.0
    %909 = vmatprep.subr.mxu0 0.0
    %910 = vmatpush1.msra.mxu0 0.0
    %911 = vmatprep.subr.mxu0 0.0
    %912 = vmatpush1.msra.mxu0 0.0
    %913 = vmatprep.subr.mxu0 0.0
    %914 = vmatpush1.msra.mxu0 0.0
    %915 = vmatprep.subr.mxu0 0.0
    %916 = vmatpush1.msra.mxu0 0.0
    %917 = vmatprep.subr.mxu0 0.0
    %918 = vmatpush1.msra.mxu0 0.0
    %919 = vmatprep.subr.mxu0 0.0
    %920 = vmatpush1.msra.mxu0 0.0
    %921 = vmatprep.subr.mxu0 0.0
    %922 = vmatpush1.msra.mxu0 0.0
    %923 = vmatprep.subr.mxu0 0.0
    %924 = vmatpush1.msra.mxu0 0.0
    %925 = vmatprep.subr.mxu0 0.0
    %926 = vmatpush1.msra.mxu0 0.0
    %927 = vmatprep.subr.mxu0 0.0
    %928 = vmatpush1.msra.mxu0 0.0
    %929 = vmatprep.subr.mxu0 0.0
    %930 = vmatpush1.msra.mxu0 0.0
    %931 = vmatprep.subr.mxu0 0.0
    %932 = vmatpush1.msra.mxu0 0.0
    %933 = vmatprep.subr.mxu0 0.0
    %934 = vmatpush1.msra.mxu0 0.0
    %935 = vmatprep.subr.mxu0 0.0
    %936 = vmatpush1.msra.mxu0 0.0
    %937 = vmatprep.subr.mxu0 0.0
    %938 = vmatpush1.msra.mxu0 0.0
    %939 = vmatprep.subr.mxu0 0.0
    %940 = vmatpush1.msra.mxu0 0.0
    %941 = vmatprep.subr.mxu0 0.0
    %942 = vmatpush1.msra.mxu0 0.0
    %943 = vmatprep.subr.mxu0 0.0
    %944 = vmatpush1.msra.mxu0 0.0
    %945 = vmatprep.subr.mxu0 0.0
    %946 = vmatpush1.msra.mxu0 0.0
    %947 = vmatprep.subr.mxu0 0.0
    %948 = vmatpush1.msra.mxu0 0.0
    %949 = vmatprep.subr.mxu0 0.0
    %950 = vmatpush1.msra.mxu0 0.0
    %951 = vmatprep.subr.mxu0 0.0
    %952 = vmatpush1.msra.mxu0 0.0
    %953 = vmatprep.subr.mxu0 0.0
    %954 = vmatpush1.msra.mxu0 0.0
    %955 = vmatprep.mubr.f32.mxu0 0.0
    %956 = vmatmul.mubr.f32.gmra.mrb[0].mxu0 %v889
    %v957 = vpop.f32.mrb[0].mxu0
    %v958 = vadd.f32 0.0, %v957
    %v959 = vpop.f32.mrb[0].mxu0
    %960 = vdwg.mxu0
    %961 = vmatprep.subr.mxu0 0.0
    %962 = vmatpush1.msra.mxu0 %v872
    %963 = vmatprep.subr.mxu0 0.0
    %964 = vmatpush1.msra.mxu0 %v873
    %965 = vmatprep.subr.mxu0 0.0
    %966 = vmatpush1.msra.mxu0 %v874
    %967 = vmatprep.subr.mxu0 0.0
    %968 = vmatpush1.msra.mxu0 %v875
    %969 = vmatprep.subr.mxu0 0.0
    %970 = vmatpush1.msra.mxu0 %v876
    %971 = vmatprep.subr.mxu0 0.0
    %972 = vmatpush1.msra.mxu0 %v877
    %973 = vmatprep.subr.mxu0 0.0
    %974 = vmatpush1.msra.mxu0 %v878
    %975 = vmatprep.subr.mxu0 0.0
    %976 = vmatpush1.msra.mxu0 %v879
    %977 = vmatprep.subr.mxu0 0.0
    %978 = vmatpush1.msra.mxu0 0.0
    %979 = vmatprep.subr.mxu0 0.0
    %980 = vmatpush1.msra.mxu0 0.0
    %981 = vmatprep.subr.mxu0 0.0
    %982 = vmatpush1.msra.mxu0 0.0
    %983 = vmatprep.subr.mxu0 0.0
    %984 = vmatpush1.msra.mxu0 0.0
    %985 = vmatprep.subr.mxu0 0.0
    %986 = vmatpush1.msra.mxu0 0.0
    %987 = vmatprep.subr.mxu0 0.0
    %988 = vmatpush1.msra.mxu0 0.0
    %989 = vmatprep.subr.mxu0 0.0
    %990 = vmatpush1.msra.mxu0 0.0
    %991 = vmatprep.subr.mxu0 0.0
    %992 = vmatpush1.msra.mxu0 0.0
    %993 = vmatprep.subr.mxu0 0.0
    %994 = vmatpush1.msra.mxu0 0.0
    %995 = vmatprep.subr.mxu0 0.0
    %996 = vmatpush1.msra.mxu0 0.0
    %997 = vmatprep.subr.mxu0 0.0
    %998 = vmatpush1.msra.mxu0 0.0
    %999 = vmatprep.subr.mxu0 0.0
    %1000 = vmatpush1.msra.mxu0 0.0
    %1001 = vmatprep.subr.mxu0 0.0
    %1002 = vmatpush1.msra.mxu0 0.0
    %1003 = vmatprep.subr.mxu0 0.0
    %1004 = vmatpush1.msra.mxu0 0.0
    %1005 = vmatprep.subr.mxu0 0.0
    %1006 = vmatpush1.msra.mxu0 0.0
    %1007 = vmatprep.subr.mxu0 0.0
    %1008 = vmatpush1.msra.mxu0 0.0
    %1009 = vmatprep.subr.mxu0 0.0
    %1010 = vmatpush1.msra.mxu0 0.0
    %1011 = vmatprep.subr.mxu0 0.0
    %1012 = vmatpush1.msra.mxu0 0.0
    %1013 = vmatprep.subr.mxu0 0.0
    %1014 = vmatpush1.msra.mxu0 0.0
    %1015 = vmatprep.subr.mxu0 0.0
    %1016 = vmatpush1.msra.mxu0 0.0
    %1017 = vmatprep.subr.mxu0 0.0
    %1018 = vmatpush1.msra.mxu0 0.0
    %1019 = vmatprep.subr.mxu0 0.0
    %1020 = vmatpush1.msra.mxu0 0.0
    %1021 = vmatprep.subr.mxu0 0.0
    %1022 = vmatpush1.msra.mxu0 0.0
    %1023 = vmatprep.subr.mxu0 0.0
    %1024 = vmatpush1.msra.mxu0 0.0
    %1025 = vmatprep.mubr.f32.mxu0 0.0
    %1026 = vmatmul.mubr.f32.gmra.mrb[0].mxu0 %v798
    %v1027 = vpop.f32.mrb[0].mxu0
    %v1028 = vadd.f32 %v958, %v1027
    %v1029 = vpop.f32.mrb[0].mxu0
    %1030 = vdwg.mxu0
    %v1032 = vlaneseq
    %v1033 = vshrl.u32 %v1032, 7
    %v1034 = vsub.s32 0, %v1033
    %v1035 = vrot.slane %v871, %v1034
    %v1037 = vadd.f32 %v1028, %v1035
    %v1038 = vmax.f32 %v1037, 0.0
    %v1039 = vld [vmem:[%s20] sm:$0x1]
    %v1040 = vld [vmem:[%s19] sm:$0xff]
    %v1041 = vld [vmem:[%s19 + $0x8] sm:$0xff]
    %v1042 = vld [vmem:[%s19 + $0x10] sm:$0xff]
    %v1043 = vld [vmem:[%s19 + $0x18] sm:$0xff]
    %v1044 = vld [vmem:[%s19 + $0x20] sm:$0xff]
    %v1045 = vld [vmem:[%s19 + $0x28] sm:$0xff]
    %v1046 = vld [vmem:[%s19 + $0x30] sm:$0xff]
    %v1047 = vld [vmem:[%s19 + $0x38] sm:$0xff]
    %v1048 = vld [vmem:[%s19 + $0x40] sm:$0xff]
    %v1049 = vld [vmem:[%s19 + $0x48] sm:$0xff]
    %v1050 = vld [vmem:[%s19 + $0x50] sm:$0xff]
    %v1051 = vld [vmem:[%s19 + $0x58] sm:$0xff]
    %v1052 = vld [vmem:[%s19 + $0x60] sm:$0xff]
    %v1053 = vld [vmem:[%s19 + $0x68] sm:$0xff]
    %v1054 = vld [vmem:[%s19 + $0x70] sm:$0xff]
    %v1055 = vld [vmem:[%s19 + $0x78] sm:$0xff]
    %v1057 = vlaneseq
    %v1058 = vshrl.u32 %v1057, 7
    %v1059 = vsub.s32 0, %v1058
    %v1060 = vrot.slane %v1039, %v1059
    %1062 = vmatprep.subr.mxu0 0.0
    %1063 = vmatpush1.msra.mxu0 %v1040
    %1064 = vmatprep.subr.mxu0 0.0
    %1065 = vmatpush1.msra.mxu0 %v1041
    %1066 = vmatprep.subr.mxu0 0.0
    %1067 = vmatpush1.msra.mxu0 %v1042
    %1068 = vmatprep.subr.mxu0 0.0
    %1069 = vmatpush1.msra.mxu0 %v1043
    %1070 = vmatprep.subr.mxu0 0.0
    %1071 = vmatpush1.msra.mxu0 %v1044
    %1072 = vmatprep.subr.mxu0 0.0
    %1073 = vmatpush1.msra.mxu0 %v1045
    %1074 = vmatprep.subr.mxu0 0.0
    %1075 = vmatpush1.msra.mxu0 %v1046
    %1076 = vmatprep.subr.mxu0 0.0
    %1077 = vmatpush1.msra.mxu0 %v1047
    %1078 = vmatprep.subr.mxu0 0.0
    %1079 = vmatpush1.msra.mxu0 %v1048
    %1080 = vmatprep.subr.mxu0 0.0
    %1081 = vmatpush1.msra.mxu0 %v1049
    %1082 = vmatprep.subr.mxu0 0.0
    %1083 = vmatpush1.msra.mxu0 %v1050
    %1084 = vmatprep.subr.mxu0 0.0
    %1085 = vmatpush1.msra.mxu0 %v1051
    %1086 = vmatprep.subr.mxu0 0.0
    %1087 = vmatpush1.msra.mxu0 %v1052
    %1088 = vmatprep.subr.mxu0 0.0
    %1089 = vmatpush1.msra.mxu0 %v1053
    %1090 = vmatprep.subr.mxu0 0.0
    %1091 = vmatpush1.msra.mxu0 %v1054
    %1092 = vmatprep.subr.mxu0 0.0
    %1093 = vmatpush1.msra.mxu0 %v1055
    %1094 = vmatprep.subr.mxu0 0.0
    %1095 = vmatpush1.msra.mxu0 0.0
    %1096 = vmatprep.subr.mxu0 0.0
    %1097 = vmatpush1.msra.mxu0 0.0
    %1098 = vmatprep.subr.mxu0 0.0
    %1099 = vmatpush1.msra.mxu0 0.0
    %1100 = vmatprep.subr.mxu0 0.0
    %1101 = vmatpush1.msra.mxu0 0.0
    %1102 = vmatprep.subr.mxu0 0.0
    %1103 = vmatpush1.msra.mxu0 0.0
    %1104 = vmatprep.subr.mxu0 0.0
    %1105 = vmatpush1.msra.mxu0 0.0
    %1106 = vmatprep.subr.mxu0 0.0
    %1107 = vmatpush1.msra.mxu0 0.0
    %1108 = vmatprep.subr.mxu0 0.0
    %1109 = vmatpush1.msra.mxu0 0.0
    %1110 = vmatprep.subr.mxu0 0.0
    %1111 = vmatpush1.msra.mxu0 0.0
    %1112 = vmatprep.subr.mxu0 0.0
    %1113 = vmatpush1.msra.mxu0 0.0
    %1114 = vmatprep.subr.mxu0 0.0
    %1115 = vmatpush1.msra.mxu0 0.0
    %1116 = vmatprep.subr.mxu0 0.0
    %1117 = vmatpush1.msra.mxu0 0.0
    %1118 = vmatprep.subr.mxu0 0.0
    %1119 = vmatpush1.msra.mxu0 0.0
    %1120 = vmatprep.subr.mxu0 0.0
    %1121 = vmatpush1.msra.mxu0 0.0
    %1122 = vmatprep.subr.mxu0 0.0
    %1123 = vmatpush1.msra.mxu0 0.0
    %1124 = vmatprep.subr.mxu0 0.0
    %1125 = vmatpush1.msra.mxu0 0.0
    %1126 = vmatprep.mubr.f32.mxu0 0.0
    %1127 = vmatmul.mubr.f32.gmra.mrb[0].mxu0 %v1038
    %v1128 = vpop.f32.mrb[0].mxu0
    %v1129 = vadd.f32 %v1060, %v1128
    %v1130 = vpop.f32.mrb[0].mxu0
    %1131 = vdwg.mxu0
    %1132 = vst.msk [vmem:[#allocation2] sm:$0xff] %vm538, %v609
    %1133 = vst.msk [vmem:[#allocation4] sm:$0xff] %vm88, %v1129
    // Predicated region
    $region86: #{tpu_custom_call.1} parent=1 // pred_check
      _
    $region87: #{tpu_custom_call.1} parent=1 // pred_check_branch
      %1135 = sbr.rel (0) target = $region89
    $region88: #{tpu_custom_call.1} parent=1 // pred_region
      %s1137 = ssub.s32 128, 128
      %1138 = vsyncadd [#allocation3], %s1137
      %s1140 = sshll.u32 [#allocation2], 4
      %s1141 = int_to_ptr.vmem [resolvable:$true] %s1140
      %1143 = dma.vmem_to_hbm [thread:$0]  %s1141, 128, %s21, [#allocation3]
    $region89: #{tpu_custom_call.1} parent=1 // pred_fallthru
      _
    // Predicated region
    $region90: #{tpu_custom_call.1} parent=1 // pred_check
      _
    $region91: #{tpu_custom_call.1} parent=1 // pred_check_branch
      %1145 = sbr.rel (0) target = $region93
    $region92: #{tpu_custom_call.1} parent=1 // pred_region
      %s1147 = ssub.s32 128, 128
      %1148 = vsyncadd [#allocation5], %s1147
      %s1150 = sshll.u32 [#allocation4], 4
      %s1151 = int_to_ptr.vmem [resolvable:$true] %s1150
      %1153 = dma.vmem_to_hbm [thread:$0]  %s1151, 128, %s22, [#allocation5]
    $region93: #{tpu_custom_call.1} parent=1 // pred_fallthru
      _
    // Predicated region
    $region94: #{tpu_custom_call.1} parent=1 // pred_check
      _
    $region95: #{tpu_custom_call.1} parent=1 // pred_check_branch
      %1155 = sbr.rel (0) target = $region97
    $region96: #{tpu_custom_call.1} parent=1 // pred_region
      %1156 = dma.done [#allocation3], 128
    $region97: #{tpu_custom_call.1} parent=1 // pred_fallthru
      _
    // Predicated region
    $region98: #{tpu_custom_call.1} parent=1 // pred_check
      _
    $region99: #{tpu_custom_call.1} parent=1 // pred_check_branch
      %1158 = sbr.rel (0) target = $region101
    $region100: #{tpu_custom_call.1} parent=1 // pred_region
      %1159 = dma.done [#allocation5], 128
    $region101: #{tpu_custom_call.1} parent=1 // pred_fallthru
      _
    %1160 = vsyncpa [#allocation3], 1
    %1161 = vsyncpa [#allocation5], 1

</llo_original>
